<compile_context>
chip_gen: v7x
topology: tpu7x:2x2x1
jax: 0.10.0
libtpu: 0.0.40
codegen_flags: <defaults>
</compile_context>

<pallas_src>
import functools

import jax
import jax.numpy as jnp
from jax.experimental import pallas as pl
from jax.experimental.pallas import tpu as pltpu


def _cross_attn_kernel(x_ref, wq_ref, k_ref, v_ref, wo_ref, bo_ref, o_ref,
                       q_sc, m_sc, l_sc, acc_sc, *, approx_recip):
    """One (batch-tile, query-tile, key-tile) grid step.

    x_ref : (BT, TN, DIM)     matmul dtype
    wq_ref: (H, DIM, DH)      matmul dtype, softmax scale pre-folded
    k_ref : (BT, H, TM, DH)   matmul dtype (head-split done in wrapper)
    v_ref : (BT, H, TM, DH)   matmul dtype
    wo_ref: (H, DH, DIM)      matmul dtype
    bo_ref: (1, DIM)          float32
    o_ref : (BT, TN, DIM)     original dtype
    q_sc  : (BT*H, TN, DH)    matmul dtype  (resident across key tiles)
    m_sc  : (BT*H, TN, 1)     f32 running max
    l_sc  : (BT*H, TN, 1)     f32 running sum
    acc_sc: (BT*H, TN, DH)    f32 running P@V accumulator
    """
    bt, tn, dim = x_ref.shape
    _, h, tm, dh = k_ref.shape
    bh = bt * h
    mm = k_ref.dtype

    kk = pl.program_id(2)
    n_kk = pl.num_programs(2)

    # ---- first key tile: project q for all heads & reset accumulators -----
    @pl.when(kk == 0)
    def _():
        # q[b,h,n,:] = x[b,n,:] @ (Wq*scale)[h]  — batched over (b*h).  The
        # broadcasts only touch leading dims, so no relayout is generated.
        x_b = jnp.broadcast_to(x_ref[...][:, None],
                               (bt, h, tn, dim)).reshape(bh, tn, dim)
        wq_b = jnp.broadcast_to(wq_ref[...][None],
                                (bt, h, dim, dh)).reshape(bh, dim, dh)
        q = jnp.einsum('znd,zde->zne', x_b, wq_b,
                       preferred_element_type=jnp.float32)
        q_sc[...] = q.astype(q_sc.dtype)
        m_sc[...] = jnp.full(m_sc.shape, -jnp.inf, m_sc.dtype)
        l_sc[...] = jnp.zeros(l_sc.shape, l_sc.dtype)
        acc_sc[...] = jnp.zeros(acc_sc.shape, acc_sc.dtype)

    kh = k_ref[...].reshape(bh, tm, dh)          # leading-dim merge only
    vh = v_ref[...].reshape(bh, tm, dh)

    # ---- scores for this key tile (contract head dim, no transpose) -------
    s = jnp.einsum('znd,zmd->znm', q_sc[...], kh,
                   preferred_element_type=jnp.float32)           # (BH,TN,TM)

    # ---- online (flash) softmax update, all in f32 -------------------------
    m_prev = m_sc[...]
    m_new = jnp.maximum(m_prev, jnp.max(s, axis=-1, keepdims=True))
    alpha = jnp.exp(m_prev - m_new)
    p = jnp.exp(s - m_new)                                        # f32
    l_sc[...] = alpha * l_sc[...] + jnp.sum(p, axis=-1, keepdims=True)
    m_sc[...] = m_new
    # Row sum taken from the f32 exp; cast to the matmul dtype only for the
    # P@V matmul so the f32 copy of the score tile can die immediately.
    pv = jnp.einsum('znm,zmd->znd', p.astype(mm), vh,
                    preferred_element_type=jnp.float32)
    acc_sc[...] = alpha * acc_sc[...] + pv

    # ---- last key tile: normalise, project out, add bias, store -----------
    @pl.when(kk == n_kk - 1)
    def _():
        inv = pl.reciprocal(l_sc[...], approx=approx_recip)       # (BH,TN,1)
        out = (acc_sc[...] * inv).astype(mm)                      # (BH,TN,DH)
        # y[b,n,:] = sum_h out[b,h,n,:] @ Wo[h]  — the Wo contraction covers
        # the head concat, so no '(b h) n d -> (b n) (h d)' transpose needed.
        wo_b = jnp.broadcast_to(wo_ref[...][None],
                                (bt, h, dh, dim)).reshape(bh, dh, dim)
        y = jnp.einsum('znd,zde->zne', out, wo_b,
                       preferred_element_type=jnp.float32)        # (BH,TN,DIM)
        y = jnp.sum(y.reshape(bt, h, tn, dim), axis=1)            # head sum
        y = y + bo_ref[...].astype(jnp.float32)
        o_ref[...] = y.astype(o_ref.dtype)


def _tpu_vmem_capacity():
    try:
        return int(pltpu.get_tpu_info().vmem_capacity_bytes)
    except Exception:
        return None


def _vmem_estimate(block_b, block_n, block_m, *, heads, dim, dim_head,
                   mm_bytes, out_bytes):
    inner = heads * dim_head
    bh = block_b * heads
    # Double-buffered streamed blocks (x, k, v, out).
    stream = 2 * (mm_bytes * block_b * block_n * dim
                  + 2 * mm_bytes * bh * block_m * dim_head
                  + out_bytes * block_b * block_n * dim)
    # Weight blocks (assume double-buffered to stay conservative) + bias.
    weights = 2 * mm_bytes * 2 * dim * inner + 2 * 4 * dim
    # Persistent scratch (q, m, l, acc).
    scratch = (mm_bytes * bh * block_n * dim_head
               + 4 * bh * block_n * (dim_head + 2))
    # Live intermediates: f32 scores + f32 exp + mm exp copy + pv + the
    # leading-dim broadcasts of x / wq / wo.
    interm = ((8 + mm_bytes) * bh * block_n * block_m
              + 4 * bh * block_n * dim_head
              + mm_bytes * (bh * block_n * dim + 2 * block_b * dim * inner))
    return stream + weights + scratch + interm


def _choose_tiles(b, n, m, *, heads, dim, dim_head, mm_bytes, out_bytes,
                  budget):
    """Largest (block_b, block_n, block_m) whose per-step footprint fits."""
    def cands(size, opts):
        cs = [o for o in opts if o < size and size % o == 0] + [size]
        return sorted(set(cs), reverse=True)

    n_cands = cands(n, (512, 256, 128))
    m_cands = cands(m, (2048, 1024, 512, 256, 128))

    def pick_bb(block_n):
        # Pack batch only when per-step work is tiny (sublane density / grid
        # overhead), but keep >= 2 steps on a parallel grid axis when b >= 2
        # so both TensorCores of a v7x chip get work.
        cap = max(1, 256 // max(block_n, 1))
        if n // block_n < 2 and b >= 2:
            cap = min(cap, max(1, b // 2))
        best = 1
        for d in range(1, min(b, cap) + 1):
            if b % d == 0:
                best = d
        return best

    est_fn = functools.partial(_vmem_estimate, heads=heads, dim=dim,
                               dim_head=dim_head, mm_bytes=mm_bytes,
                               out_bytes=out_bytes)
    for bn in n_cands:
        for bm in m_cands:
            bb = pick_bb(bn)
            est = est_fn(bb, bn, bm)
            if est <= budget:
                return bb, bn, bm, est
    bb, bn, bm = 1, n_cands[-1], m_cands[-1]
    return bb, bn, bm, est_fn(bb, bn, bm)


def _const_spec(shape, single_buffer):
    """BlockSpec for a grid-invariant (weight) block."""
    ndim = len(shape)
    index_map = lambda i, j, kk: (0,) * ndim
    if single_buffer:
        try:  # constant-index blocks only need one pipeline buffer (v7x VMEM)
            return pl.BlockSpec(shape, index_map, pipeline_mode=pl.Buffered(1))
        except Exception:
            pass
    return pl.BlockSpec(shape, index_map)


def cross_attention(x, k, v, wq, wo, bo, *, heads, dim_head,
                    matmul_dtype=jnp.bfloat16):
    b, n, dim = x.shape
    m = k.shape[1]
    inner = heads * dim_head
    assert k.shape == (b, m, inner) and v.shape == (b, m, inner)
    assert wq.shape == (dim, inner) and wo.shape == (inner, dim)
    assert bo.shape == (1, dim)
    # TODO(synk): the project_out=False branch (heads==1 and dim_head==dim ->
    # nn.Identity) is not wired up; this wrapper always applies to_out.

    mm = jnp.dtype(matmul_dtype)
    exact = mm == jnp.dtype(jnp.float32)
    mm_bytes = mm.itemsize
    out_bytes = jnp.dtype(x.dtype).itemsize

    # ---- one-time wrapper-side layout & dtype prep (not re-done per tile) --
    scale = dim_head ** -0.5
    x_mm = x.astype(mm)
    kh = k.reshape(b, m, heads, dim_head).transpose(0, 2, 1, 3).astype(mm)
    vh = v.reshape(b, m, heads, dim_head).transpose(0, 2, 1, 3).astype(mm)
    wq_r = (wq * scale).reshape(dim, heads, dim_head).transpose(1, 0, 2).astype(mm)
    wo_r = wo.reshape(heads, dim_head, dim).astype(mm)
    bo_f = bo.astype(jnp.float32)

    # ---- generation-aware tile selection & VMEM budget ---------------------
    cap = _tpu_vmem_capacity()
    phys_vmem = cap if cap is not None else 64 * 1024 * 1024   # conservative
    single_buffer_weights = cap is not None and cap <= 64 * 1024 * 1024  # v7x
    budget = int(phys_vmem * 0.8)
    block_b, block_n, block_m, est = _choose_tiles(
        b, n, m, heads=heads, dim=dim, dim_head=dim_head,
        mm_bytes=mm_bytes, out_bytes=out_bytes, budget=budget)
    grid = (b // block_b, n // block_n, m // block_m)
    vmem_limit = int(min(phys_vmem * 0.9,
                         max(32 * 1024 * 1024, 2 * est)))

    kernel = functools.partial(_cross_attn_kernel, approx_recip=not exact)

    # Advisory cost estimate so XLA can schedule around the custom call.
    flops = (2 * b * n * dim * inner                 # q projection
             + 4 * b * heads * n * m * dim_head      # scores + P@V
             + 2 * b * n * inner * dim)              # output projection
    bytes_accessed = (x_mm.size * mm_bytes
                      + (kh.size + vh.size) * mm_bytes * max(1, n // block_n)
                      + (wq_r.size + wo_r.size) * mm_bytes
                      + bo_f.size * 4 + b * n * dim * out_bytes)
    cost = pl.CostEstimate(flops=int(flops),
                           transcendentals=int(b * heads * n * m),
                           bytes_accessed=int(bytes_accessed))

    return pl.pallas_call(
        kernel,
        out_shape=jax.ShapeDtypeStruct((b, n, dim), x.dtype),
        grid_spec=pltpu.PrefetchScalarGridSpec(
            num_scalar_prefetch=0,
            grid=grid,
            in_specs=[
                pl.BlockSpec((block_b, block_n, dim),
                             lambda i, j, kk: (i, j, 0)),                  # x
                _const_spec((heads, dim, dim_head), single_buffer_weights),  # Wq*scale
                pl.BlockSpec((block_b, heads, block_m, dim_head),
                             lambda i, j, kk: (i, 0, kk, 0)),              # k
                pl.BlockSpec((block_b, heads, block_m, dim_head),
                             lambda i, j, kk: (i, 0, kk, 0)),              # v
                _const_spec((heads, dim_head, dim), single_buffer_weights),  # Wo
                _const_spec((1, dim), single_buffer_weights),              # bias
            ],
            out_specs=pl.BlockSpec((block_b, block_n, dim),
                                   lambda i, j, kk: (i, j, 0)),
            scratch_shapes=[
                pltpu.VMEM((block_b * heads, block_n, dim_head), mm),       # q
                pltpu.VMEM((block_b * heads, block_n, 1), jnp.float32),     # max
                pltpu.VMEM((block_b * heads, block_n, 1), jnp.float32),     # sum
                pltpu.VMEM((block_b * heads, block_n, dim_head),
                           jnp.float32),                                    # acc
            ]),
        compiler_params=pltpu.CompilerParams(
            dimension_semantics=("parallel", "parallel", "arbitrary"),
            vmem_limit_bytes=vmem_limit),
        cost_estimate=cost,
    )(x_mm, wq_r, kh, vh, wo_r, bo_f)


def cross_attention_reference(x, k, v, wq, wo, bo, *, heads, dim_head):
    """Pure-JAX reference mirroring the PyTorch forward exactly."""
    b, n, dim = x.shape
    scale = dim_head ** -0.5
    q = jnp.einsum('bnd,de->bne', x, wq)

    def split(t):  # 'b n (h d) -> b h n d'
        return t.reshape(b, t.shape[1], heads, dim_head).transpose(0, 2, 1, 3)

    qh, kh, vh = split(q), split(k), split(v)
    dots = jnp.einsum('bhid,bhjd->bhij', qh, kh) * scale
    attn = jax.nn.softmax(dots, axis=-1)
    out = jnp.einsum('bhij,bhjd->bhid', attn, vh)
    out = out.transpose(0, 2, 1, 3).reshape(b, n, heads * dim_head)
    return jnp.einsum('bne,ed->bnd', out, wo) + bo[0]


if __name__ == "__main__":
    # Small shapes consistent with the module's forward.
    B, N, M = 2, 8, 8          # batch, query seq, key/value seq
    DIM = 32                   # model dim
    HEADS, DIM_HEAD = 2, 16    # inner_dim = 32
    INNER = HEADS * DIM_HEAD

    key = jax.random.PRNGKey(0)
    k_x, k_k, k_v, k_wq, k_wo, k_bo = jax.random.split(key, 6)

    x = jax.random.normal(k_x, (B, N, DIM), dtype=jnp.float32)
    k = jax.random.normal(k_k, (B, M, INNER), dtype=jnp.float32)
    v = jax.random.normal(k_v, (B, M, INNER), dtype=jnp.float32)

    # to_q has no bias; to_out Linear has a bias; Dropout(p=0.0) is identity.
    wq = jax.random.normal(k_wq, (DIM, INNER), dtype=jnp.float32) * 0.05
    wo = jax.random.normal(k_wo, (INNER, DIM), dtype=jnp.float32) * 0.05
    bo = jax.random.normal(k_bo, (1, DIM), dtype=jnp.float32) * 0.01

    ref = cross_attention_reference(x, k, v, wq, wo, bo,
                                    heads=HEADS, dim_head=DIM_HEAD)

    # Exact f32-matmul path: tight check against the reference.
    out_f32 = jax.block_until_ready(
        cross_attention(x, k, v, wq, wo, bo, heads=HEADS, dim_head=DIM_HEAD,
                        matmul_dtype=jnp.float32))
    assert out_f32.shape == (B, N, DIM)
    err_f32 = float(jnp.max(jnp.abs(out_f32 - ref)))
    assert err_f32 < 1e-3, f"f32 max abs err {err_f32}"

    # Default bf16-MXU path: looser tolerance (bf16 operand rounding only;
    # accumulation and the whole softmax remain f32).
    out_bf16 = jax.block_until_ready(
        cross_attention(x, k, v, wq, wo, bo, heads=HEADS, dim_head=DIM_HEAD))
    assert out_bf16.shape == (B, N, DIM)
    err_bf16 = float(jnp.max(jnp.abs(out_bf16 - ref)))
    assert err_bf16 < 5e-2, f"bf16 max abs err {err_bf16}"

    print("KERNEL_OK")
</pallas_src>

<mosaic_0001>
module attributes {stable_mosaic.version = 11 : i64} {
  func.func @_cross_attn_kernel(%arg0: i32, %arg1: i32, %arg2: i32, %arg3: memref<1x8x32xf32, #tpu.memory_space<vmem>>, %arg4: memref<2x32x16xf32, #tpu.memory_space<vmem>>, %arg5: memref<1x2x8x16xf32, #tpu.memory_space<vmem>>, %arg6: memref<1x2x8x16xf32, #tpu.memory_space<vmem>>, %arg7: memref<2x16x32xf32, #tpu.memory_space<vmem>>, %arg8: memref<1x32xf32, #tpu.memory_space<vmem>>, %arg9: memref<1x8x32xf32, #tpu.memory_space<vmem>>, %arg10: memref<2x8x16xf32, #tpu.memory_space<vmem>>, %arg11: memref<2x8x1xf32, #tpu.memory_space<vmem>>, %arg12: memref<2x8x1xf32, #tpu.memory_space<vmem>>, %arg13: memref<2x8x16xf32, #tpu.memory_space<vmem>>) attributes {dimension_semantics = [#tpu.dimension_semantics<parallel>, #tpu.dimension_semantics<parallel>, #tpu.dimension_semantics<arbitrary>], iteration_bounds = array<i64: 2, 1, 1>, scalar_prefetch = 0 : i64, scratch_operands = 4 : i64, tpu.core_type = #tpu.core_type<tc>, window_params = [{transform_indices = @transform_0, window_bounds = array<i64: 1, 8, 32>}, {pipeline_mode = #tpu.pipeline_mode<synchronous>, transform_indices = @transform_1, window_bounds = array<i64: 2, 32, 16>}, {transform_indices = @transform_2, window_bounds = array<i64: 1, 2, 8, 16>}, {transform_indices = @transform_3, window_bounds = array<i64: 1, 2, 8, 16>}, {pipeline_mode = #tpu.pipeline_mode<synchronous>, transform_indices = @transform_4, window_bounds = array<i64: 2, 16, 32>}, {pipeline_mode = #tpu.pipeline_mode<synchronous>, transform_indices = @transform_5, window_bounds = array<i64: 1, 32>}, {transform_indices = @transform_6, window_bounds = array<i64: 1, 8, 32>}]} {
    %c0_i32 = arith.constant 0 : i32
    %0 = arith.cmpi eq, %arg2, %c0_i32 : i32
    %1 = arith.extui %0 : i1 to i32
    %c0_i32_0 = arith.constant 0 : i32
    %2 = arith.cmpi ne, %1, %c0_i32_0 : i32
    scf.if %2 {
      %c0_34 = arith.constant 0 : index
      %c0_35 = arith.constant 0 : index
      %c0_36 = arith.constant 0 : index
      %34 = vector.load %arg3[%c0_34, %c0_35, %c0_36] : memref<1x8x32xf32, #tpu.memory_space<vmem>>, vector<1x8x32xf32>
      %35 = vector.shape_cast %34 : vector<1x8x32xf32> to vector<1x1x8x32xf32>
      %36 = vector.shape_cast %35 : vector<1x1x8x32xf32> to vector<1x1x8x32xf32>
      %37 = vector.broadcast %36 : vector<1x1x8x32xf32> to vector<1x2x8x32xf32>
      %38 = vector.shape_cast %37 : vector<1x2x8x32xf32> to vector<2x8x32xf32>
      %c0_37 = arith.constant 0 : index
      %c0_38 = arith.constant 0 : index
      %c0_39 = arith.constant 0 : index
      %39 = vector.load %arg4[%c0_37, %c0_38, %c0_39] : memref<2x32x16xf32, #tpu.memory_space<vmem>>, vector<2x32x16xf32>
      %40 = vector.shape_cast %39 : vector<2x32x16xf32> to vector<1x2x32x16xf32>
      %41 = vector.shape_cast %40 : vector<1x2x32x16xf32> to vector<2x32x16xf32>
      "tpu.trace_start"() <{level = 10 : i32, message = "znd,zde->zne"}> : () -> ()
      %cst_40 = arith.constant dense<0.000000e+00> : vector<2x8x16xf32>
      %42 = tpu.matmul %38, %41, %cst_40 {dimension_numbers = #tpu.dot_dimension_numbers<[2], [1], [1], [2], [0, 0, 0, 1, 1, 2], [0], [0]>} : vector<2x8x32xf32>, vector<2x32x16xf32>, vector<2x8x16xf32> -> vector<2x8x16xf32>
      "tpu.trace_stop"() : () -> ()
      %c0_41 = arith.constant 0 : index
      %c0_42 = arith.constant 0 : index
      %c0_43 = arith.constant 0 : index
      %43 = vector.load %arg10[%c0_41, %c0_42, %c0_43] : memref<2x8x16xf32, #tpu.memory_space<vmem>>, vector<2x8x16xf32>
      tpu.vector_store %arg10[%c0_41, %c0_42, %c0_43], %42 {strides = array<i32>} : memref<2x8x16xf32, #tpu.memory_space<vmem>>, vector<2x8x16xf32>,
      %cst_44 = arith.constant 0xFF800000 : f32
      %44 = vector.broadcast %cst_44 : f32 to vector<2x8x1xf32>
      %c0_45 = arith.constant 0 : index
      %c0_46 = arith.constant 0 : index
      %c0_47 = arith.constant 0 : index
      %45 = vector.load %arg11[%c0_45, %c0_46, %c0_47] : memref<2x8x1xf32, #tpu.memory_space<vmem>>, vector<2x8x1xf32>
      tpu.vector_store %arg11[%c0_45, %c0_46, %c0_47], %44 {strides = array<i32>} : memref<2x8x1xf32, #tpu.memory_space<vmem>>, vector<2x8x1xf32>,
      %cst_48 = arith.constant 0.000000e+00 : f32
      %46 = vector.broadcast %cst_48 : f32 to vector<2x8x1xf32>
      %c0_49 = arith.constant 0 : index
      %c0_50 = arith.constant 0 : index
      %c0_51 = arith.constant 0 : index
      %47 = vector.load %arg12[%c0_49, %c0_50, %c0_51] : memref<2x8x1xf32, #tpu.memory_space<vmem>>, vector<2x8x1xf32>
      tpu.vector_store %arg12[%c0_49, %c0_50, %c0_51], %46 {strides = array<i32>} : memref<2x8x1xf32, #tpu.memory_space<vmem>>, vector<2x8x1xf32>,
      %cst_52 = arith.constant 0.000000e+00 : f32
      %48 = vector.broadcast %cst_52 : f32 to vector<2x8x16xf32>
      %c0_53 = arith.constant 0 : index
      %c0_54 = arith.constant 0 : index
      %c0_55 = arith.constant 0 : index
      %49 = vector.load %arg13[%c0_53, %c0_54, %c0_55] : memref<2x8x16xf32, #tpu.memory_space<vmem>>, vector<2x8x16xf32>
      tpu.vector_store %arg13[%c0_53, %c0_54, %c0_55], %48 {strides = array<i32>} : memref<2x8x16xf32, #tpu.memory_space<vmem>>, vector<2x8x16xf32>,
    } else {
    }
    %c0 = arith.constant 0 : index
    %c0_1 = arith.constant 0 : index
    %c0_2 = arith.constant 0 : index
    %c0_3 = arith.constant 0 : index
    %3 = vector.load %arg5[%c0, %c0_1, %c0_2, %c0_3] : memref<1x2x8x16xf32, #tpu.memory_space<vmem>>, vector<1x2x8x16xf32>
    %4 = vector.shape_cast %3 : vector<1x2x8x16xf32> to vector<2x8x16xf32>
    %c0_4 = arith.constant 0 : index
    %c0_5 = arith.constant 0 : index
    %c0_6 = arith.constant 0 : index
    %c0_7 = arith.constant 0 : index
    %5 = vector.load %arg6[%c0_4, %c0_5, %c0_6, %c0_7] : memref<1x2x8x16xf32, #tpu.memory_space<vmem>>, vector<1x2x8x16xf32>
    %6 = vector.shape_cast %5 : vector<1x2x8x16xf32> to vector<2x8x16xf32>
    %c0_8 = arith.constant 0 : index
    %c0_9 = arith.constant 0 : index
    %c0_10 = arith.constant 0 : index
    %7 = vector.load %arg10[%c0_8, %c0_9, %c0_10] : memref<2x8x16xf32, #tpu.memory_space<vmem>>, vector<2x8x16xf32>
    "tpu.trace_start"() <{level = 10 : i32, message = "znd,zmd->znm"}> : () -> ()
    %cst = arith.constant dense<0.000000e+00> : vector<2x8x8xf32>
    %8 = tpu.matmul %7, %4, %cst {dimension_numbers = #tpu.dot_dimension_numbers<[2], [2], [1], [1], [0, 0, 0, 1, 1, 1], [0], [0]>} : vector<2x8x16xf32>, vector<2x8x16xf32>, vector<2x8x8xf32> -> vector<2x8x8xf32>
    "tpu.trace_stop"() : () -> ()
    %c0_11 = arith.constant 0 : index
    %c0_12 = arith.constant 0 : index
    %c0_13 = arith.constant 0 : index
    %9 = vector.load %arg11[%c0_11, %c0_12, %c0_13] : memref<2x8x1xf32, #tpu.memory_space<vmem>>, vector<2x8x1xf32>
    %cst_14 = arith.constant dense<0xFF800000> : vector<2x8xf32>
    %10 = vector.multi_reduction <maximumf>, %8, %cst_14 [2] : vector<2x8x8xf32> to vector<2x8xf32>
    %11 = vector.shape_cast %10 : vector<2x8xf32> to vector<2x8x1xf32>
    %12 = arith.maximumf %9, %11 : vector<2x8x1xf32>
    %13 = arith.subf %9, %12 : vector<2x8x1xf32>
    %14 = math.exp %13 : vector<2x8x1xf32>
    %15 = vector.broadcast %12 : vector<2x8x1xf32> to vector<2x8x8xf32>
    %16 = arith.subf %8, %15 : vector<2x8x8xf32>
    %17 = math.exp %16 : vector<2x8x8xf32>
    %c0_15 = arith.constant 0 : index
    %c0_16 = arith.constant 0 : index
    %c0_17 = arith.constant 0 : index
    %18 = vector.load %arg12[%c0_15, %c0_16, %c0_17] : memref<2x8x1xf32, #tpu.memory_space<vmem>>, vector<2x8x1xf32>
    %19 = arith.mulf %14, %18 : vector<2x8x1xf32>
    %cst_18 = arith.constant dense<0.000000e+00> : vector<2x8xf32>
    %20 = vector.multi_reduction <add>, %17, %cst_18 [2] : vector<2x8x8xf32> to vector<2x8xf32>
    %21 = vector.shape_cast %20 : vector<2x8xf32> to vector<2x8x1xf32>
    %22 = arith.addf %19, %21 : vector<2x8x1xf32>
    %c0_19 = arith.constant 0 : index
    %c0_20 = arith.constant 0 : index
    %c0_21 = arith.constant 0 : index
    %23 = vector.load %arg12[%c0_19, %c0_20, %c0_21] : memref<2x8x1xf32, #tpu.memory_space<vmem>>, vector<2x8x1xf32>
    tpu.vector_store %arg12[%c0_19, %c0_20, %c0_21], %22 {strides = array<i32>} : memref<2x8x1xf32, #tpu.memory_space<vmem>>, vector<2x8x1xf32>,
    %c0_22 = arith.constant 0 : index
    %c0_23 = arith.constant 0 : index
    %c0_24 = arith.constant 0 : index
    %24 = vector.load %arg11[%c0_22, %c0_23, %c0_24] : memref<2x8x1xf32, #tpu.memory_space<vmem>>, vector<2x8x1xf32>
    tpu.vector_store %arg11[%c0_22, %c0_23, %c0_24], %12 {strides = array<i32>} : memref<2x8x1xf32, #tpu.memory_space<vmem>>, vector<2x8x1xf32>,
    "tpu.trace_start"() <{level = 10 : i32, message = "znm,zmd->znd"}> : () -> ()
    %cst_25 = arith.constant dense<0.000000e+00> : vector<2x8x16xf32>
    %25 = tpu.matmul %17, %6, %cst_25 {dimension_numbers = #tpu.dot_dimension_numbers<[2], [1], [1], [2], [0, 0, 0, 1, 1, 2], [0], [0]>} : vector<2x8x8xf32>, vector<2x8x16xf32>, vector<2x8x16xf32> -> vector<2x8x16xf32>
    "tpu.trace_stop"() : () -> ()
    %c0_26 = arith.constant 0 : index
    %c0_27 = arith.constant 0 : index
    %c0_28 = arith.constant 0 : index
    %26 = vector.load %arg13[%c0_26, %c0_27, %c0_28] : memref<2x8x16xf32, #tpu.memory_space<vmem>>, vector<2x8x16xf32>
    %27 = vector.broadcast %14 : vector<2x8x1xf32> to vector<2x8x16xf32>
    %28 = arith.mulf %27, %26 : vector<2x8x16xf32>
    %29 = arith.addf %28, %25 : vector<2x8x16xf32>
    %c0_29 = arith.constant 0 : index
    %c0_30 = arith.constant 0 : index
    %c0_31 = arith.constant 0 : index
    %30 = vector.load %arg13[%c0_29, %c0_30, %c0_31] : memref<2x8x16xf32, #tpu.memory_space<vmem>>, vector<2x8x16xf32>
    tpu.vector_store %arg13[%c0_29, %c0_30, %c0_31], %29 {strides = array<i32>} : memref<2x8x16xf32, #tpu.memory_space<vmem>>, vector<2x8x16xf32>,
    %c0_i32_32 = arith.constant 0 : i32
    %31 = arith.cmpi eq, %arg2, %c0_i32_32 : i32
    %32 = arith.extui %31 : i1 to i32
    %c0_i32_33 = arith.constant 0 : i32
    %33 = arith.cmpi ne, %32, %c0_i32_33 : i32
    scf.if %33 {
      %c0_34 = arith.constant 0 : index
      %c0_35 = arith.constant 0 : index
      %c0_36 = arith.constant 0 : index
      %34 = vector.load %arg12[%c0_34, %c0_35, %c0_36] : memref<2x8x1xf32, #tpu.memory_space<vmem>>, vector<2x8x1xf32>
      %35 = tpu.reciprocal %34 : vector<2x8x1xf32> -> vector<2x8x1xf32>
      %c0_37 = arith.constant 0 : index
      %c0_38 = arith.constant 0 : index
      %c0_39 = arith.constant 0 : index
      %36 = vector.load %arg13[%c0_37, %c0_38, %c0_39] : memref<2x8x16xf32, #tpu.memory_space<vmem>>, vector<2x8x16xf32>
      %37 = vector.broadcast %35 : vector<2x8x1xf32> to vector<2x8x16xf32>
      %38 = arith.mulf %36, %37 : vector<2x8x16xf32>
      %c0_40 = arith.constant 0 : index
      %c0_41 = arith.constant 0 : index
      %c0_42 = arith.constant 0 : index
      %39 = vector.load %arg7[%c0_40, %c0_41, %c0_42] : memref<2x16x32xf32, #tpu.memory_space<vmem>>, vector<2x16x32xf32>
      %40 = vector.shape_cast %39 : vector<2x16x32xf32> to vector<1x2x16x32xf32>
      %41 = vector.shape_cast %40 : vector<1x2x16x32xf32> to vector<2x16x32xf32>
      "tpu.trace_start"() <{level = 10 : i32, message = "znd,zde->zne"}> : () -> ()
      %cst_43 = arith.constant dense<0.000000e+00> : vector<2x8x32xf32>
      %42 = tpu.matmul %38, %41, %cst_43 {dimension_numbers = #tpu.dot_dimension_numbers<[2], [1], [1], [2], [0, 0, 0, 1, 1, 2], [0], [0]>} : vector<2x8x16xf32>, vector<2x16x32xf32>, vector<2x8x32xf32> -> vector<2x8x32xf32>
      "tpu.trace_stop"() : () -> ()
      %43 = vector.shape_cast %42 : vector<2x8x32xf32> to vector<1x2x8x32xf32>
      %cst_44 = arith.constant dense<0.000000e+00> : vector<1x8x32xf32>
      %44 = vector.multi_reduction <add>, %43, %cst_44 [1] : vector<1x2x8x32xf32> to vector<1x8x32xf32>
      %c0_45 = arith.constant 0 : index
      %c0_46 = arith.constant 0 : index
      %45 = vector.load %arg8[%c0_45, %c0_46] : memref<1x32xf32, #tpu.memory_space<vmem>>, vector<1x32xf32>
      %46 = vector.shape_cast %45 : vector<1x32xf32> to vector<1x1x32xf32>
      %47 = vector.broadcast %46 : vector<1x1x32xf32> to vector<1x8x32xf32>
      %48 = arith.addf %44, %47 : vector<1x8x32xf32>
      %c0_47 = arith.constant 0 : index
      %c0_48 = arith.constant 0 : index
      %c0_49 = arith.constant 0 : index
      %49 = vector.load %arg9[%c0_47, %c0_48, %c0_49] : memref<1x8x32xf32, #tpu.memory_space<vmem>>, vector<1x8x32xf32>
      tpu.vector_store %arg9[%c0_47, %c0_48, %c0_49], %48 {strides = array<i32>} : memref<1x8x32xf32, #tpu.memory_space<vmem>>, vector<1x8x32xf32>,
    } else {
    }
    return
  }
  func.func @transform_0(%arg0: i32, %arg1: i32, %arg2: i32) -> (i32, i32, i32) {
    %c0_i32 = arith.constant 0 : i32
    %c0_i32_0 = arith.constant 0 : i32
    return %arg0, %arg1, %c0_i32 : i32, i32, i32
  }
  func.func @transform_1(%arg0: i32, %arg1: i32, %arg2: i32) -> (i32, i32, i32) {
    %c0_i32 = arith.constant 0 : i32
    %c0_i32_0 = arith.constant 0 : i32
    %c0_i32_1 = arith.constant 0 : i32
    %c0_i32_2 = arith.constant 0 : i32
    return %c0_i32, %c0_i32_0, %c0_i32_1 : i32, i32, i32
  }
  func.func @transform_2(%arg0: i32, %arg1: i32, %arg2: i32) -> (i32, i32, i32, i32) {
    %c0_i32 = arith.constant 0 : i32
    %c0_i32_0 = arith.constant 0 : i32
    %c0_i32_1 = arith.constant 0 : i32
    return %arg0, %c0_i32, %arg2, %c0_i32_0 : i32, i32, i32, i32
  }
  func.func @transform_3(%arg0: i32, %arg1: i32, %arg2: i32) -> (i32, i32, i32, i32) {
    %c0_i32 = arith.constant 0 : i32
    %c0_i32_0 = arith.constant 0 : i32
    %c0_i32_1 = arith.constant 0 : i32
    return %arg0, %c0_i32, %arg2, %c0_i32_0 : i32, i32, i32, i32
  }
  func.func @transform_4(%arg0: i32, %arg1: i32, %arg2: i32) -> (i32, i32, i32) {
    %c0_i32 = arith.constant 0 : i32
    %c0_i32_0 = arith.constant 0 : i32
    %c0_i32_1 = arith.constant 0 : i32
    %c0_i32_2 = arith.constant 0 : i32
    return %c0_i32, %c0_i32_0, %c0_i32_1 : i32, i32, i32
  }
  func.func @transform_5(%arg0: i32, %arg1: i32, %arg2: i32) -> (i32, i32) {
    %c0_i32 = arith.constant 0 : i32
    %c0_i32_0 = arith.constant 0 : i32
    %c0_i32_1 = arith.constant 0 : i32
    return %c0_i32, %c0_i32_0 : i32, i32
  }
  func.func @transform_6(%arg0: i32, %arg1: i32, %arg2: i32) -> (i32, i32, i32) {
    %c0_i32 = arith.constant 0 : i32
    %c0_i32_0 = arith.constant 0 : i32
    return %arg0, %arg1, %c0_i32 : i32, i32, i32
  }
}

</mosaic_0001>

<llo_original>
// kernel: tpu_custom_call.1
$region0: #{tpu_custom_call.1}
  #allocation0 [shape = 'u32[]', space=smem, size = 0x4, offset = 0x4, fixed_abs, tag = 'smem constant byte address 0x4 - core index']
  #allocation1 [shape = 'u32[144,128]{1,0:T(1,128)}', space=vmem, size = 0x12000, scoped, tag = 'internal scratch']
  #allocation2 [shape = 'f32[2,8,16]{2,1,0:T(8,128)}', space=vmem, size = 0x2000, scoped, tag = 'scratch operand']
  #allocation3 [shape = 'f32[2,8,1]{2,1,0:T(8,128)}', space=vmem, size = 0x2000, scoped, tag = 'scratch operand']
  #allocation4 [shape = 'f32[2,8,1]{2,1,0:T(8,128)}', space=vmem, size = 0x2000, scoped, tag = 'scratch operand']
  #allocation5 [shape = 'f32[2,8,16]{2,1,0:T(8,128)}', space=vmem, size = 0x2000, scoped, tag = 'scratch operand']
  %s0 = inlined_call_operand.hbm [shape: f32[2,8,32], index: 0, kind: input, shape index: {}]
  %s1 = inlined_call_operand.vmem [shape: f32[2,32,16], index: 1, kind: input, shape index: {}]
  %s2 = inlined_call_operand.vmem [shape: f32[2,2,8,16], index: 2, kind: input, shape index: {}]
  %s3 = inlined_call_operand.vmem [shape: f32[2,2,8,16], index: 3, kind: input, shape index: {}]
  %s4 = inlined_call_operand.vmem [shape: f32[2,16,32], index: 4, kind: input, shape index: {}]
  %s5 = inlined_call_operand.vmem [shape: f32[1,32], index: 5, kind: input, shape index: {}]
  %s6 = inlined_call_operand.hbm [shape: f32[2,8,32], index: 6, kind: output, shape index: {}]
  %s7 = sld [smem:[#allocation0]]
  $region69: #{tpu_custom_call.1} parent=0
    _
  %s9 = ssub.s32 1, %s7
  %s10 = scalar_select 0, %s9, %s7
  $region1: #{tpu_custom_call.1} parent=0
    #allocation6 [shape = 'u8[8192]{0}', space=vmem, size = 0x2000, scoped, tag = 'input window, operand 0']
    #allocation7 [shape = 's32[2]{0}', space=sflag, size = 0x8, scoped, tag = 'scoped memory for tpu_custom_call.1']
    #allocation8 [shape = 's32[2]{0}', space=sflag, size = 0x8, scoped, tag = 'scoped memory for tpu_custom_call.1']
    #allocation9 [shape = 'u8[8192]{0}', space=vmem, size = 0x2000, scoped, tag = 'output window, operand 0']
    %11 = vsyncpa [#allocation7], 0
    %s12 = scalar_lea.sflag [#allocation7], 1
    %13 = vsyncpa %s12, 0
    %14 = vsyncpa [#allocation8], 0
    %s15 = scalar_lea.sflag [#allocation8], 1
    %16 = vsyncpa %s15, 0
    loop: start=0, step=1, limit=4
    $region2: #{tpu_custom_call.1} parent=1 // loop_pre_header
      _
    $region3: #{tpu_custom_call.1} parent=1 // loop_header
      %s18 = sphi 0, %s22
      %p19 = scmp.ge.s32.totalorder %s18, 4
      %s25 = sphi 0, %s44
      %s26 = sphi 0, %s40
      %s27 = sphi 0, %s36
      %s28 = sphi 0, %s25
      %s29 = sphi 0, %s26
      %s30 = sphi 0, %s27
      %s31 = sphi 0, %s28
      %s32 = sphi 0, %s29
      %s33 = sphi 0, %s30
      %s49 = sphi 0, %s51
      %s52 = sphi 0, %s49
      %s53 = sphi 0, %s52
      %s69 = sphi 0, %s53
      %s73 = sphi 0, %s73
      %s75 = sphi 0, %s73
      %s76 = sphi 0, %s75
      %s90 = sphi 0, %s76
      %s98 = sphi 0, %s100
      %s101 = sphi 0, %s98
      %s102 = sphi 0, %s101
      %s118 = sphi 0, %s102
      %s126 = sphi 0, %s128
      %s129 = sphi 0, %s126
      %s130 = sphi 0, %s129
      %s146 = sphi 0, %s130
      %s150 = sphi 0, %s150
      %s152 = sphi 0, %s150
      %s153 = sphi 0, %s152
      %s167 = sphi 0, %s153
      %s171 = sphi 0, %s171
      %s173 = sphi 0, %s171
      %s174 = sphi 0, %s173
      %s188 = sphi 0, %s174
      %s196 = sphi 0, %s198
      %s199 = sphi 0, %s196
      %s200 = sphi 0, %s199
      %s216 = sphi 0, %s200
    $region4: #{tpu_custom_call.1} parent=1 // loop_header_branch
      %21 = sbr.rel (%p19) target = $region8
    $region5: #{tpu_custom_call.1} parent=1 // loop_body
      %s23 = ssub.s32 %s18, 1
      %s24 = ssub.s32 %s18, 2
      %s34 = sadd.s32 1, %s27
      %p35 = scmp.ge.s32.totalorder %s34, 1
      %s36 = scalar_select %p35, 0, %s34
      %s37 = sadd.s32 1, %s26
      %s38 = scalar_select %p35, %s37, %s26
      %p39 = scmp.ge.s32.totalorder %s38, 1
      %s40 = scalar_select %p39, 0, %s38
      %s41 = sadd.s32 1, %s25
      %s42 = scalar_select %p39, %s41, %s25
      %p43 = scmp.ge.s32.totalorder %s42, 2
      %s44 = scalar_select %p43, 0, %s42
      %s45 = ssub.s32 %s25, %s44
      %s46 = ssub.s32 %s26, %s40
      %s47 = sor.u32 %s45, %s46
      %p48 = scmp.eq.s32.totalorder %s47, 0
      %s50 = sadd.s32 %s49, 1
      %s51 = scalar_select %p48, %s49, %s50
      %p54 = pneg %p48
      %p55 = scmp.eq.s32.totalorder %s18, 1
      %p56 = por %p54, %p55
      %p57 = scmp.ne.s32.totalorder %s49, %s52
      %p58 = scmp.eq.s32.totalorder %s18, 0
      %p59 = por %p57, %p58
      %p60 = scmp.ne.s32.totalorder %s49, %s52
      %p61 = scmp.eq.s32.totalorder %s23, 1
      %p62 = por %p60, %p61
      %p63 = scmp.ne.s32.totalorder %s52, %s53
      %p64 = scmp.eq.s32.totalorder %s23, 0
      %p65 = por %p63, %p64
      %p66 = scmp.ne.s32.totalorder %s52, %s53
      %p67 = scmp.eq.s32.totalorder %s24, 1
      %p68 = por %p66, %p67
      %p70 = scmp.ne.s32.totalorder %s53, %s69
      %p71 = scmp.eq.s32.totalorder %s24, 0
      %p72 = por %p70, %p71
      %s74 = sadd.s32 %s73, 1
      %p77 = scmp.eq.s32.totalorder %s18, 1
      %p78 = scmp.ne.s32.totalorder %s73, %s75
      %p79 = scmp.eq.s32.totalorder %s18, 0
      %p80 = por %p78, %p79
      %p81 = scmp.ne.s32.totalorder %s73, %s75
      %p82 = scmp.eq.s32.totalorder %s23, 1
      %p83 = por %p81, %p82
      %p84 = scmp.ne.s32.totalorder %s75, %s76
      %p85 = scmp.eq.s32.totalorder %s23, 0
      %p86 = por %p84, %p85
      %p87 = scmp.ne.s32.totalorder %s75, %s76
      %p88 = scmp.eq.s32.totalorder %s24, 1
      %p89 = por %p87, %p88
      %p91 = scmp.ne.s32.totalorder %s76, %s90
      %p92 = scmp.eq.s32.totalorder %s24, 0
      %p93 = por %p91, %p92
      %s94 = ssub.s32 %s25, %s44
      %s95 = ssub.s32 %s27, %s36
      %s96 = sor.u32 %s94, %s95
      %p97 = scmp.eq.s32.totalorder %s96, 0
      %s99 = sadd.s32 %s98, 1
      %s100 = scalar_select %p97, %s98, %s99
      %p103 = pneg %p97
      %p104 = scmp.eq.s32.totalorder %s18, 1
      %p105 = por %p103, %p104
      %p106 = scmp.ne.s32.totalorder %s98, %s101
      %p107 = scmp.eq.s32.totalorder %s18, 0
      %p108 = por %p106, %p107
      %p109 = scmp.ne.s32.totalorder %s98, %s101
      %p110 = scmp.eq.s32.totalorder %s23, 1
      %p111 = por %p109, %p110
      %p112 = scmp.ne.s32.totalorder %s101, %s102
      %p113 = scmp.eq.s32.totalorder %s23, 0
      %p114 = por %p112, %p113
      %p115 = scmp.ne.s32.totalorder %s101, %s102
      %p116 = scmp.eq.s32.totalorder %s24, 1
      %p117 = por %p115, %p116
      %p119 = scmp.ne.s32.totalorder %s102, %s118
      %p120 = scmp.eq.s32.totalorder %s24, 0
      %p121 = por %p119, %p120
      %s122 = ssub.s32 %s25, %s44
      %s123 = ssub.s32 %s27, %s36
      %s124 = sor.u32 %s122, %s123
      %p125 = scmp.eq.s32.totalorder %s124, 0
      %s127 = sadd.s32 %s126, 1
      %s128 = scalar_select %p125, %s126, %s127
      %p131 = pneg %p125
      %p132 = scmp.eq.s32.totalorder %s18, 1
      %p133 = por %p131, %p132
      %p134 = scmp.ne.s32.totalorder %s126, %s129
      %p135 = scmp.eq.s32.totalorder %s18, 0
      %p136 = por %p134, %p135
      %p137 = scmp.ne.s32.totalorder %s126, %s129
      %p138 = scmp.eq.s32.totalorder %s23, 1
      %p139 = por %p137, %p138
      %p140 = scmp.ne.s32.totalorder %s129, %s130
      %p141 = scmp.eq.s32.totalorder %s23, 0
      %p142 = por %p140, %p141
      %p143 = scmp.ne.s32.totalorder %s129, %s130
      %p144 = scmp.eq.s32.totalorder %s24, 1
      %p145 = por %p143, %p144
      %p147 = scmp.ne.s32.totalorder %s130, %s146
      %p148 = scmp.eq.s32.totalorder %s24, 0
      %p149 = por %p147, %p148
      %s151 = sadd.s32 %s150, 1
      %p154 = scmp.eq.s32.totalorder %s18, 1
      %p155 = scmp.ne.s32.totalorder %s150, %s152
      %p156 = scmp.eq.s32.totalorder %s18, 0
      %p157 = por %p155, %p156
      %p158 = scmp.ne.s32.totalorder %s150, %s152
      %p159 = scmp.eq.s32.totalorder %s23, 1
      %p160 = por %p158, %p159
      %p161 = scmp.ne.s32.totalorder %s152, %s153
      %p162 = scmp.eq.s32.totalorder %s23, 0
      %p163 = por %p161, %p162
      %p164 = scmp.ne.s32.totalorder %s152, %s153
      %p165 = scmp.eq.s32.totalorder %s24, 1
      %p166 = por %p164, %p165
      %p168 = scmp.ne.s32.totalorder %s153, %s167
      %p169 = scmp.eq.s32.totalorder %s24, 0
      %p170 = por %p168, %p169
      %s172 = sadd.s32 %s171, 1
      %p175 = scmp.eq.s32.totalorder %s18, 1
      %p176 = scmp.ne.s32.totalorder %s171, %s173
      %p177 = scmp.eq.s32.totalorder %s18, 0
      %p178 = por %p176, %p177
      %p179 = scmp.ne.s32.totalorder %s171, %s173
      %p180 = scmp.eq.s32.totalorder %s23, 1
      %p181 = por %p179, %p180
      %p182 = scmp.ne.s32.totalorder %s173, %s174
      %p183 = scmp.eq.s32.totalorder %s23, 0
      %p184 = por %p182, %p183
      %p185 = scmp.ne.s32.totalorder %s173, %s174
      %p186 = scmp.eq.s32.totalorder %s24, 1
      %p187 = por %p185, %p186
      %p189 = scmp.ne.s32.totalorder %s174, %s188
      %p190 = scmp.eq.s32.totalorder %s24, 0
      %p191 = por %p189, %p190
      %s192 = ssub.s32 %s25, %s44
      %s193 = ssub.s32 %s26, %s40
      %s194 = sor.u32 %s192, %s193
      %p195 = scmp.eq.s32.totalorder %s194, 0
      %s197 = sadd.s32 %s196, 1
      %s198 = scalar_select %p195, %s196, %s197
      %p201 = pneg %p195
      %p202 = scmp.eq.s32.totalorder %s18, 1
      %p203 = por %p201, %p202
      %p204 = scmp.ne.s32.totalorder %s196, %s199
      %p205 = scmp.eq.s32.totalorder %s18, 0
      %p206 = por %p204, %p205
      %p207 = scmp.ne.s32.totalorder %s196, %s199
      %p208 = scmp.eq.s32.totalorder %s23, 1
      %p209 = por %p207, %p208
      %p210 = scmp.ne.s32.totalorder %s199, %s200
      %p211 = scmp.eq.s32.totalorder %s23, 0
      %p212 = por %p210, %p211
      %p213 = scmp.ne.s32.totalorder %s199, %s200
      %p214 = scmp.eq.s32.totalorder %s24, 1
      %p215 = por %p213, %p214
      %p217 = scmp.ne.s32.totalorder %s200, %s216
      %p218 = scmp.eq.s32.totalorder %s24, 0
      %p219 = por %p217, %p218
      %p220 = scmp.le.s32.totalorder 1, %s18
      %p221 = scmp.lt.s32.totalorder %s18, 3
      %p222 = pnand %p220, %p221
      %p223 = pneg %p222
      // Predicated region
      $region9: #{tpu_custom_call.1} parent=5 // pred_check
        _
      $region10: #{tpu_custom_call.1} parent=5 // pred_check_branch
        %225 = sbr.rel (%p222) target = $region12
      $region11: #{tpu_custom_call.1} parent=5 // pred_region
        %s226 = ssub.s32 %s18, 1
        // Predicated region
        $region13: #{tpu_custom_call.1} parent=11 // pred_check
          %p227 = pneg %p86
        $region14: #{tpu_custom_call.1} parent=11 // pred_check_branch
          %229 = sbr.rel (%p227) target = $region16
        $region15: #{tpu_custom_call.1} parent=11 // pred_region
          _
        $region16: #{tpu_custom_call.1} parent=11 // pred_fallthru
          _
        // Predicated region
        $region17: #{tpu_custom_call.1} parent=11 // pred_check
          %p230 = pneg %p163
        $region18: #{tpu_custom_call.1} parent=11 // pred_check_branch
          %232 = sbr.rel (%p230) target = $region20
        $region19: #{tpu_custom_call.1} parent=11 // pred_region
          _
        $region20: #{tpu_custom_call.1} parent=11 // pred_fallthru
          _
        // Predicated region
        $region21: #{tpu_custom_call.1} parent=11 // pred_check
          %p233 = pneg %p184
        $region22: #{tpu_custom_call.1} parent=11 // pred_check_branch
          %235 = sbr.rel (%p233) target = $region24
        $region23: #{tpu_custom_call.1} parent=11 // pred_region
          _
        $region24: #{tpu_custom_call.1} parent=11 // pred_fallthru
          _
      $region12: #{tpu_custom_call.1} parent=5 // pred_fallthru
        _
      %p236 = scmp.lt.s32.totalorder %s18, 2
      // Predicated region
      $region25: #{tpu_custom_call.1} parent=5 // pred_check
        %p237 = pneg %p236
      $region26: #{tpu_custom_call.1} parent=5 // pred_check_branch
        %239 = sbr.rel (%p237) target = $region28
      $region27: #{tpu_custom_call.1} parent=5 // pred_region
        // Predicated region
        $region29: #{tpu_custom_call.1} parent=27 // pred_check
          %p240 = pneg %p59
        $region30: #{tpu_custom_call.1} parent=27 // pred_check_branch
          %242 = sbr.rel (%p240) target = $region32
        $region31: #{tpu_custom_call.1} parent=27 // pred_region
          %s243 = sand.u32 %s49, 1
          %s244 = scalar_lea.sflag [#allocation7], %s243
          %s245 = sand.u32 %s49, 1
          %s246 = smul.addr %s245, 8
          %s247 = scalar_lea.vmem [#allocation6], %s246
          %s249 = ssub.s32 128, 128
          %250 = vsyncadd %s244, %s249
          %s251 = sadd.s32 %s26, %s25
          %s252 = smul.addr %s251, 128
          %s253 = scalar_lea.hbm %s0, %s252
          %s255 = sshll.u32 %s247, 4
          %s256 = int_to_ptr.vmem [resolvable:$true] %s255
          %258 = dma.hbm_to_vmem [thread:$0]  %s253, 128, %s256, %s244
        $region32: #{tpu_custom_call.1} parent=27 // pred_fallthru
          _
        // Predicated region
        $region33: #{tpu_custom_call.1} parent=27 // pred_check
          %p259 = pneg %p108
        $region34: #{tpu_custom_call.1} parent=27 // pred_check_branch
          %261 = sbr.rel (%p259) target = $region36
        $region35: #{tpu_custom_call.1} parent=27 // pred_region
          %p262 = scmp.lt.s32.totalorder %s25, 1
          %s263 = scalar_select %p262, %s25, 1
          %p264 = scmp.lt.s32.totalorder %s27, 0
          %s265 = scalar_select %p264, %s27, 0
          %s266 = smul.addr %s263, 2
          %s267 = sadd.s32 %s265, %s266
          %s268 = smul.addr %s267, 8
          %s269 = scalar_lea.vmem %s2, %s268
        $region36: #{tpu_custom_call.1} parent=27 // pred_fallthru
          _
        // Predicated region
        $region37: #{tpu_custom_call.1} parent=27 // pred_check
          %p270 = pneg %p136
        $region38: #{tpu_custom_call.1} parent=27 // pred_check_branch
          %272 = sbr.rel (%p270) target = $region40
        $region39: #{tpu_custom_call.1} parent=27 // pred_region
          %p273 = scmp.lt.s32.totalorder %s25, 1
          %s274 = scalar_select %p273, %s25, 1
          %p275 = scmp.lt.s32.totalorder %s27, 0
          %s276 = scalar_select %p275, %s27, 0
          %s277 = smul.addr %s274, 2
          %s278 = sadd.s32 %s276, %s277
          %s279 = smul.addr %s278, 8
          %s280 = scalar_lea.vmem %s3, %s279
        $region40: #{tpu_custom_call.1} parent=27 // pred_fallthru
          _
      $region28: #{tpu_custom_call.1} parent=5 // pred_fallthru
        _
      %p281 = scmp.le.s32.totalorder 1, %s18
      %p282 = scmp.lt.s32.totalorder %s18, 3
      %p283 = pnand %p281, %p282
      %p284 = pneg %p283
      // Predicated region
      $region41: #{tpu_custom_call.1} parent=5 // pred_check
        _
      $region42: #{tpu_custom_call.1} parent=5 // pred_check_branch
        %286 = sbr.rel (%p283) target = $region44
      $region43: #{tpu_custom_call.1} parent=5 // pred_region
        %s287 = ssub.s32 %s18, 1
        %s288 = sand.u32 %s52, 1
        %s289 = scalar_lea.sflag [#allocation7], %s288
        %s290 = sand.u32 %s52, 1
        %s291 = smul.addr %s290, 8
        %s292 = scalar_lea.vmem [#allocation6], %s291
        // Predicated region
        $region45: #{tpu_custom_call.1} parent=43 // pred_check
          %p293 = pneg %p65
        $region46: #{tpu_custom_call.1} parent=43 // pred_check_branch
          %295 = sbr.rel (%p293) target = $region48
        $region47: #{tpu_custom_call.1} parent=43 // pred_region
          %296 = dma.done %s289, 128
        $region48: #{tpu_custom_call.1} parent=43 // pred_fallthru
          _
        %s297 = sand.u32 %s52, 1
        %s298 = scalar_lea.sflag [#allocation7], %s297
        %s299 = sand.u32 %s52, 1
        %s300 = smul.addr %s299, 8
        %s301 = scalar_lea.vmem [#allocation6], %s300
        %p302 = pneg %p65
        %p303 = pneg %p62
        %p304 = pneg %p86
        %p305 = pneg %p83
        %p306 = scmp.lt.s32.totalorder %s28, 1
        %s307 = scalar_select %p306, %s28, 1
        %p308 = scmp.lt.s32.totalorder %s30, 0
        %s309 = scalar_select %p308, %s30, 0
        %s310 = smul.addr %s307, 2
        %s311 = sadd.s32 %s309, %s310
        %s312 = smul.addr %s311, 8
        %s313 = scalar_lea.vmem %s2, %s312
        %p314 = pneg %p114
        %p315 = pneg %p111
        %p316 = scmp.lt.s32.totalorder %s28, 1
        %s317 = scalar_select %p316, %s28, 1
        %p318 = scmp.lt.s32.totalorder %s30, 0
        %s319 = scalar_select %p318, %s30, 0
        %s320 = smul.addr %s317, 2
        %s321 = sadd.s32 %s319, %s320
        %s322 = smul.addr %s321, 8
        %s323 = scalar_lea.vmem %s3, %s322
        %p324 = pneg %p142
        %p325 = pneg %p139
        %p326 = pneg %p163
        %p327 = pneg %p160
        %p328 = pneg %p184
        %p329 = pneg %p181
        %p330 = pneg %p212
        %p331 = pneg %p209
        %s332 = sand.u32 %s199, 1
        %s333 = scalar_lea.sflag [#allocation8], %s332
        %s334 = sand.u32 %s199, 1
        %s335 = smul.addr %s334, 8
        %s336 = scalar_lea.vmem [#allocation9], %s335
        %p337 = scmp.lt.s32.totalorder %s28, 1
        %s338 = scalar_select %p337, %s28, 1
        %p339 = scmp.lt.s32.totalorder %s30, 0
        %s340 = scalar_select %p339, %s30, 0
        %s341 = smul.addr %s338, 2
        %s342 = sadd.s32 %s340, %s341
        %s343 = smul.addr %s342, 8
        %s344 = scalar_lea.vmem %s2, %s343
        %p345 = scmp.lt.s32.totalorder %s28, 1
        %s346 = scalar_select %p345, %s28, 1
        %p347 = scmp.lt.s32.totalorder %s30, 0
        %s348 = scalar_select %p347, %s30, 0
        %s349 = smul.addr %s346, 2
        %s350 = sadd.s32 %s348, %s349
        %s351 = smul.addr %s350, 8
        %s352 = scalar_lea.vmem %s3, %s351
        %p353 = scmp.eq.s32.totalorder %s30, 0
        // Predicated region
        $region49: #{tpu_custom_call.1} parent=43 // pred_check
          %p354 = pneg %p353
        $region50: #{tpu_custom_call.1} parent=43 // pred_check_branch
          %356 = sbr.rel (%p354) target = $region52
        $region51: #{tpu_custom_call.1} parent=43 // pred_region
          %v357 = vld [vmem:[%s292] sm:$0xff]
          %v358 = vld [vmem:[%s1] sm:$0xff]
          %v359 = vld [vmem:[%s1 + $0x8] sm:$0xff]
          %v360 = vld [vmem:[%s1 + $0x10] sm:$0xff]
          %v361 = vld [vmem:[%s1 + $0x18] sm:$0xff]
          %v362 = vld [vmem:[%s1 + $0x20] sm:$0xff]
          %v363 = vld [vmem:[%s1 + $0x28] sm:$0xff]
          %v364 = vld [vmem:[%s1 + $0x30] sm:$0xff]
          %v365 = vld [vmem:[%s1 + $0x38] sm:$0xff]
          %vm366 = vcmask 261120
          %v368 = vsel %vm366, %v357, 0
          %370 = vmatprep.subr.mxu0 0.0
          %371 = vmatpush1.msra.mxu0 %v358
          %372 = vmatprep.subr.mxu0 0.0
          %373 = vmatpush1.msra.mxu0 %v359
          %374 = vmatprep.subr.mxu0 0.0
          %375 = vmatpush1.msra.mxu0 %v360
          %376 = vmatprep.subr.mxu0 0.0
          %377 = vmatpush1.msra.mxu0 %v361
          %378 = vmatprep.subr.mxu0 0.0
          %379 = vmatpush1.msra.mxu0 0.0
          %380 = vmatprep.subr.mxu0 0.0
          %381 = vmatpush1.msra.mxu0 0.0
          %382 = vmatprep.subr.mxu0 0.0
          %383 = vmatpush1.msra.mxu0 0.0
          %384 = vmatprep.subr.mxu0 0.0
          %385 = vmatpush1.msra.mxu0 0.0
          %386 = vmatprep.subr.mxu0 0.0
          %387 = vmatpush1.msra.mxu0 0.0
          %388 = vmatprep.subr.mxu0 0.0
          %389 = vmatpush1.msra.mxu0 0.0
          %390 = vmatprep.subr.mxu0 0.0
          %391 = vmatpush1.msra.mxu0 0.0
          %392 = vmatprep.subr.mxu0 0.0
          %393 = vmatpush1.msra.mxu0 0.0
          %394 = vmatprep.subr.mxu0 0.0
          %395 = vmatpush1.msra.mxu0 0.0
          %396 = vmatprep.subr.mxu0 0.0
          %397 = vmatpush1.msra.mxu0 0.0
          %398 = vmatprep.subr.mxu0 0.0
          %399 = vmatpush1.msra.mxu0 0.0
          %400 = vmatprep.subr.mxu0 0.0
          %401 = vmatpush1.msra.mxu0 0.0
          %402 = vmatprep.subr.mxu0 0.0
          %403 = vmatpush1.msra.mxu0 0.0
          %404 = vmatprep.subr.mxu0 0.0
          %405 = vmatpush1.msra.mxu0 0.0
          %406 = vmatprep.subr.mxu0 0.0
          %407 = vmatpush1.msra.mxu0 0.0
          %408 = vmatprep.subr.mxu0 0.0
          %409 = vmatpush1.msra.mxu0 0.0
          %410 = vmatprep.subr.mxu0 0.0
          %411 = vmatpush1.msra.mxu0 0.0
          %412 = vmatprep.subr.mxu0 0.0
          %413 = vmatpush1.msra.mxu0 0.0
          %414 = vmatprep.subr.mxu0 0.0
          %415 = vmatpush1.msra.mxu0 0.0
          %416 = vmatprep.subr.mxu0 0.0
          %417 = vmatpush1.msra.mxu0 0.0
          %418 = vmatprep.subr.mxu0 0.0
          %419 = vmatpush1.msra.mxu0 0.0
          %420 = vmatprep.subr.mxu0 0.0
          %421 = vmatpush1.msra.mxu0 0.0
          %422 = vmatprep.subr.mxu0 0.0
          %423 = vmatpush1.msra.mxu0 0.0
          %424 = vmatprep.subr.mxu0 0.0
          %425 = vmatpush1.msra.mxu0 0.0
          %426 = vmatprep.subr.mxu0 0.0
          %427 = vmatpush1.msra.mxu0 0.0
          %428 = vmatprep.subr.mxu0 0.0
          %429 = vmatpush1.msra.mxu0 0.0
          %430 = vmatprep.subr.mxu0 0.0
          %431 = vmatpush1.msra.mxu0 0.0
          %432 = vmatprep.subr.mxu0 0.0
          %433 = vmatpush1.msra.mxu0 0.0
          %434 = vmatprep.mubr.f32.mxu0 0.0
          %435 = vmatmul.mubr.f32.gmra.mrb[0].mxu0 %v368
          %v436 = vpop.f32.mrb[0].mxu0
          %v437 = vadd.f32 0.0, %v436
          %v438 = vpop.f32.mrb[0].mxu0
          %439 = vdwg.mxu0
          %440 = vmatprep.subr.mxu0 0.0
          %441 = vmatpush1.msra.mxu0 %v362
          %442 = vmatprep.subr.mxu0 0.0
          %443 = vmatpush1.msra.mxu0 %v363
          %444 = vmatprep.subr.mxu0 0.0
          %445 = vmatpush1.msra.mxu0 %v364
          %446 = vmatprep.subr.mxu0 0.0
          %447 = vmatpush1.msra.mxu0 %v365
          %448 = vmatprep.subr.mxu0 0.0
          %449 = vmatpush1.msra.mxu0 0.0
          %450 = vmatprep.subr.mxu0 0.0
          %451 = vmatpush1.msra.mxu0 0.0
          %452 = vmatprep.subr.mxu0 0.0
          %453 = vmatpush1.msra.mxu0 0.0
          %454 = vmatprep.subr.mxu0 0.0
          %455 = vmatpush1.msra.mxu0 0.0
          %456 = vmatprep.subr.mxu0 0.0
          %457 = vmatpush1.msra.mxu0 0.0
          %458 = vmatprep.subr.mxu0 0.0
          %459 = vmatpush1.msra.mxu0 0.0
          %460 = vmatprep.subr.mxu0 0.0
          %461 = vmatpush1.msra.mxu0 0.0
          %462 = vmatprep.subr.mxu0 0.0
          %463 = vmatpush1.msra.mxu0 0.0
          %464 = vmatprep.subr.mxu0 0.0
          %465 = vmatpush1.msra.mxu0 0.0
          %466 = vmatprep.subr.mxu0 0.0
          %467 = vmatpush1.msra.mxu0 0.0
          %468 = vmatprep.subr.mxu0 0.0
          %469 = vmatpush1.msra.mxu0 0.0
          %470 = vmatprep.subr.mxu0 0.0
          %471 = vmatpush1.msra.mxu0 0.0
          %472 = vmatprep.subr.mxu0 0.0
          %473 = vmatpush1.msra.mxu0 0.0
          %474 = vmatprep.subr.mxu0 0.0
          %475 = vmatpush1.msra.mxu0 0.0
          %476 = vmatprep.subr.mxu0 0.0
          %477 = vmatpush1.msra.mxu0 0.0
          %478 = vmatprep.subr.mxu0 0.0
          %479 = vmatpush1.msra.mxu0 0.0
          %480 = vmatprep.subr.mxu0 0.0
          %481 = vmatpush1.msra.mxu0 0.0
          %482 = vmatprep.subr.mxu0 0.0
          %483 = vmatpush1.msra.mxu0 0.0
          %484 = vmatprep.subr.mxu0 0.0
          %485 = vmatpush1.msra.mxu0 0.0
          %486 = vmatprep.subr.mxu0 0.0
          %487 = vmatpush1.msra.mxu0 0.0
          %488 = vmatprep.subr.mxu0 0.0
          %489 = vmatpush1.msra.mxu0 0.0
          %490 = vmatprep.subr.mxu0 0.0
          %491 = vmatpush1.msra.mxu0 0.0
          %492 = vmatprep.subr.mxu0 0.0
          %493 = vmatpush1.msra.mxu0 0.0
          %494 = vmatprep.subr.mxu0 0.0
          %495 = vmatpush1.msra.mxu0 0.0
          %496 = vmatprep.subr.mxu0 0.0
          %497 = vmatpush1.msra.mxu0 0.0
          %498 = vmatprep.subr.mxu0 0.0
          %499 = vmatpush1.msra.mxu0 0.0
          %500 = vmatprep.subr.mxu0 0.0
          %501 = vmatpush1.msra.mxu0 0.0
          %502 = vmatprep.subr.mxu0 0.0
          %503 = vmatpush1.msra.mxu0 0.0
          %504 = vmatprep.mubr.f32.mxu0 0.0
          %505 = vmatmul.mubr.f32.gmra.mrb[0].mxu0 %v368
          %v506 = vpop.f32.mrb[0].mxu0
          %v507 = vadd.f32 0.0, %v506
          %v508 = vpop.f32.mrb[0].mxu0
          %509 = vdwg.mxu0
          %vm510 = vcmask 130048
          %511 = vst.msk [vmem:[#allocation2] sm:$0xff] %vm510, %v437
          %512 = vst.msk [vmem:[#allocation2 + $0x8] sm:$0xff] %vm510, %v507
          %vm513 = vcmask 7168
          %514 = vst.msk [vmem:[#allocation3] sm:$0xff] %vm513, -inf
          %515 = vst.msk [vmem:[#allocation3 + $0x8] sm:$0xff] %vm513, -inf
          %516 = vst.msk [vmem:[#allocation4] sm:$0xff] %vm513, 0.0
          %517 = vst.msk [vmem:[#allocation4 + $0x8] sm:$0xff] %vm513, 0.0
          %518 = vst.msk [vmem:[#allocation5] sm:$0xff] %vm510, 0.0
          %519 = vst.msk [vmem:[#allocation5 + $0x8] sm:$0xff] %vm510, 0.0
        $region52: #{tpu_custom_call.1} parent=43 // pred_fallthru
          _
        %v520 = vld [vmem:[%s344] sm:$0xff]
        %v521 = vld [vmem:[%s344 + $0x8] sm:$0xff]
        %v522 = vld [vmem:[%s352] sm:$0xff]
        %v523 = vld [vmem:[%s352 + $0x8] sm:$0xff]
        %v524 = vld [vmem:[#allocation2] sm:$0xff]
        %v525 = vld [vmem:[#allocation2 + $0x8] sm:$0xff]
        %vm526 = vcmask 130048
        %v528 = vsel %vm526, %v524, 0
        %v531 = vsel %vm526, %v520, 0
        %533 = vmatprep.subr.mxu0 0.0
        %534 = vmatpush1.xpose.msra.mxu0 %v531
        %535 = vmatprep.subr.mxu0 0.0
        %536 = vmatpush1.xpose.msra.mxu0 0.0
        %537 = vmatprep.subr.mxu0 0.0
        %538 = vmatpush1.xpose.msra.mxu0 0.0
        %539 = vmatprep.subr.mxu0 0.0
        %540 = vmatpush1.xpose.msra.mxu0 0.0
        %541 = vmatprep.subr.mxu0 0.0
        %542 = vmatpush1.xpose.msra.mxu0 0.0
        %543 = vmatprep.subr.mxu0 0.0
        %544 = vmatpush1.xpose.msra.mxu0 0.0
        %545 = vmatprep.subr.mxu0 0.0
        %546 = vmatpush1.xpose.msra.mxu0 0.0
        %547 = vmatprep.subr.mxu0 0.0
        %548 = vmatpush1.xpose.msra.mxu0 0.0
        %549 = vmatprep.subr.mxu0 0.0
        %550 = vmatpush1.xpose.msra.mxu0 0.0
        %551 = vmatprep.subr.mxu0 0.0
        %552 = vmatpush1.xpose.msra.mxu0 0.0
        %553 = vmatprep.subr.mxu0 0.0
        %554 = vmatpush1.xpose.msra.mxu0 0.0
        %555 = vmatprep.subr.mxu0 0.0
        %556 = vmatpush1.xpose.msra.mxu0 0.0
        %557 = vmatprep.subr.mxu0 0.0
        %558 = vmatpush1.xpose.msra.mxu0 0.0
        %559 = vmatprep.subr.mxu0 0.0
        %560 = vmatpush1.xpose.msra.mxu0 0.0
        %561 = vmatprep.subr.mxu0 0.0
        %562 = vmatpush1.xpose.msra.mxu0 0.0
        %563 = vmatprep.subr.mxu0 0.0
        %564 = vmatpush1.xpose.msra.mxu0 0.0
        %565 = vmatprep.subr.mxu0 0.0
        %566 = vmatpush1.xpose.msra.mxu0 0.0
        %567 = vmatprep.subr.mxu0 0.0
        %568 = vmatpush1.xpose.msra.mxu0 0.0
        %569 = vmatprep.subr.mxu0 0.0
        %570 = vmatpush1.xpose.msra.mxu0 0.0
        %571 = vmatprep.subr.mxu0 0.0
        %572 = vmatpush1.xpose.msra.mxu0 0.0
        %573 = vmatprep.subr.mxu0 0.0
        %574 = vmatpush1.xpose.msra.mxu0 0.0
        %575 = vmatprep.subr.mxu0 0.0
        %576 = vmatpush1.xpose.msra.mxu0 0.0
        %577 = vmatprep.subr.mxu0 0.0
        %578 = vmatpush1.xpose.msra.mxu0 0.0
        %579 = vmatprep.subr.mxu0 0.0
        %580 = vmatpush1.xpose.msra.mxu0 0.0
        %581 = vmatprep.subr.mxu0 0.0
        %582 = vmatpush1.xpose.msra.mxu0 0.0
        %583 = vmatprep.subr.mxu0 0.0
        %584 = vmatpush1.xpose.msra.mxu0 0.0
        %585 = vmatprep.subr.mxu0 0.0
        %586 = vmatpush1.xpose.msra.mxu0 0.0
        %587 = vmatprep.subr.mxu0 0.0
        %588 = vmatpush1.xpose.msra.mxu0 0.0
        %589 = vmatprep.subr.mxu0 0.0
        %590 = vmatpush1.xpose.msra.mxu0 0.0
        %591 = vmatprep.subr.mxu0 0.0
        %592 = vmatpush1.xpose.msra.mxu0 0.0
        %593 = vmatprep.subr.mxu0 0.0
        %594 = vmatpush1.xpose.msra.mxu0 0.0
        %595 = vmatprep.subr.mxu0 0.0
        %596 = vmatpush1.xpose.msra.mxu0 0.0
        %597 = vmatprep.mubr.f32.mxu0 0.0
        %598 = vmatmul.mubr.f32.gmra.mrb[0].mxu0 %v528
        %v599 = vpop.f32.mrb[0].mxu0
        %v600 = vadd.f32 0.0, %v599
        %v601 = vpop.f32.mrb[0].mxu0
        %602 = vdwg.mxu0
        %v604 = vsel %vm526, %v525, 0
        %v607 = vsel %vm526, %v521, 0
        %609 = vmatprep.subr.mxu0 0.0
        %610 = vmatpush1.xpose.msra.mxu0 %v607
        %611 = vmatprep.subr.mxu0 0.0
        %612 = vmatpush1.xpose.msra.mxu0 0.0
        %613 = vmatprep.subr.mxu0 0.0
        %614 = vmatpush1.xpose.msra.mxu0 0.0
        %615 = vmatprep.subr.mxu0 0.0
        %616 = vmatpush1.xpose.msra.mxu0 0.0
        %617 = vmatprep.subr.mxu0 0.0
        %618 = vmatpush1.xpose.msra.mxu0 0.0
        %619 = vmatprep.subr.mxu0 0.0
        %620 = vmatpush1.xpose.msra.mxu0 0.0
        %621 = vmatprep.subr.mxu0 0.0
        %622 = vmatpush1.xpose.msra.mxu0 0.0
        %623 = vmatprep.subr.mxu0 0.0
        %624 = vmatpush1.xpose.msra.mxu0 0.0
        %625 = vmatprep.subr.mxu0 0.0
        %626 = vmatpush1.xpose.msra.mxu0 0.0
        %627 = vmatprep.subr.mxu0 0.0
        %628 = vmatpush1.xpose.msra.mxu0 0.0
        %629 = vmatprep.subr.mxu0 0.0
        %630 = vmatpush1.xpose.msra.mxu0 0.0
        %631 = vmatprep.subr.mxu0 0.0
        %632 = vmatpush1.xpose.msra.mxu0 0.0
        %633 = vmatprep.subr.mxu0 0.0
        %634 = vmatpush1.xpose.msra.mxu0 0.0
        %635 = vmatprep.subr.mxu0 0.0
        %636 = vmatpush1.xpose.msra.mxu0 0.0
        %637 = vmatprep.subr.mxu0 0.0
        %638 = vmatpush1.xpose.msra.mxu0 0.0
        %639 = vmatprep.subr.mxu0 0.0
        %640 = vmatpush1.xpose.msra.mxu0 0.0
        %641 = vmatprep.subr.mxu0 0.0
        %642 = vmatpush1.xpose.msra.mxu0 0.0
        %643 = vmatprep.subr.mxu0 0.0
        %644 = vmatpush1.xpose.msra.mxu0 0.0
        %645 = vmatprep.subr.mxu0 0.0
        %646 = vmatpush1.xpose.msra.mxu0 0.0
        %647 = vmatprep.subr.mxu0 0.0
        %648 = vmatpush1.xpose.msra.mxu0 0.0
        %649 = vmatprep.subr.mxu0 0.0
        %650 = vmatpush1.xpose.msra.mxu0 0.0
        %651 = vmatprep.subr.mxu0 0.0
        %652 = vmatpush1.xpose.msra.mxu0 0.0
        %653 = vmatprep.subr.mxu0 0.0
        %654 = vmatpush1.xpose.msra.mxu0 0.0
        %655 = vmatprep.subr.mxu0 0.0
        %656 = vmatpush1.xpose.msra.mxu0 0.0
        %657 = vmatprep.subr.mxu0 0.0
        %658 = vmatpush1.xpose.msra.mxu0 0.0
        %659 = vmatprep.subr.mxu0 0.0
        %660 = vmatpush1.xpose.msra.mxu0 0.0
        %661 = vmatprep.subr.mxu0 0.0
        %662 = vmatpush1.xpose.msra.mxu0 0.0
        %663 = vmatprep.subr.mxu0 0.0
        %664 = vmatpush1.xpose.msra.mxu0 0.0
        %665 = vmatprep.subr.mxu0 0.0
        %666 = vmatpush1.xpose.msra.mxu0 0.0
        %667 = vmatprep.subr.mxu0 0.0
        %668 = vmatpush1.xpose.msra.mxu0 0.0
        %669 = vmatprep.subr.mxu0 0.0
        %670 = vmatpush1.xpose.msra.mxu0 0.0
        %671 = vmatprep.subr.mxu0 0.0
        %672 = vmatpush1.xpose.msra.mxu0 0.0
        %673 = vmatprep.mubr.f32.mxu0 0.0
        %674 = vmatmul.mubr.f32.gmra.mrb[0].mxu0 %v604
        %v675 = vpop.f32.mrb[0].mxu0
        %v676 = vadd.f32 0.0, %v675
        %v677 = vpop.f32.mrb[0].mxu0
        %678 = vdwg.mxu0
        %v679 = vld [vmem:[#allocation3] sm:$0xff]
        %v680 = vld [vmem:[#allocation3 + $0x8] sm:$0xff]
        %vm681 = vcmask 64512
        %v682 = vsel %vm681, %v600, -inf
        %683 = vmax.xlane.f32.xlu0 %v682
        %v684 = vpop.xlane.xlu0 %683
        %v685 = vsel %vm681, %v676, -inf
        %686 = vmax.xlane.f32.xlu0 %v685
        %v687 = vpop.xlane.xlu0 %686
        %v688 = vmax.f32 %v679, %v684
        %v689 = vmax.f32 %v680, %v687
        %v690 = vsub.f32 %v679, %v688
        %v691 = vsub.f32 %v680, %v689
        %v692 = vmul.f32 %v690, 1.442695
        %v693 = vpow.pop %v692
        %v694 = vmul.f32 %v691, 1.442695
        %v695 = vpow.pop %v694
        %697 = vset.pattern.permute.xlu0 0
        %698 = vperm.xlu0 %697, %v688
        %v699 = vpop.permute.xlu0 %698
        %702 = vset.pattern.permute.xlu0 0
        %703 = vperm.xlu0 %702, %v689
        %v704 = vpop.permute.xlu0 %703
        %v706 = vsub.f32 %v600, %v699
        %v707 = vsub.f32 %v676, %v704
        %v708 = vmul.f32 %v706, 1.442695
        %v709 = vpow.pop %v708
        %v710 = vmul.f32 %v707, 1.442695
        %v711 = vpow.pop %v710
        %v712 = vld [vmem:[#allocation4] sm:$0xff]
        %v713 = vld [vmem:[#allocation4 + $0x8] sm:$0xff]
        %v714 = vmul.f32 %v693, %v712
        %v715 = vmul.f32 %v695, %v713
        %v716 = vsel %vm681, %v709, 0.0
        %717 = vadd.xlane.f32.xlu0 %v716
        %v718 = vpop.xlane.xlu0 %717
        %v719 = vsel %vm681, %v711, 0.0
        %720 = vadd.xlane.f32.xlu0 %v719
        %v721 = vpop.xlane.xlu0 %720
        %v722 = vadd.f32 %v714, %v718
        %v723 = vadd.f32 %v715, %v721
        %vm724 = vcmask 7168
        %725 = vst.msk [vmem:[#allocation4] sm:$0xff] %vm724, %v722
        %726 = vst.msk [vmem:[#allocation4 + $0x8] sm:$0xff] %vm724, %v723
        %727 = vst.msk [vmem:[#allocation3] sm:$0xff] %vm724, %v688
        %728 = vst.msk [vmem:[#allocation3 + $0x8] sm:$0xff] %vm724, %v689
        %v730 = vsel %vm681, %v709, 0
        %732 = vmatprep.subr.mxu0 0.0
        %733 = vmatpush1.msra.mxu0 %v522
        %734 = vmatprep.subr.mxu0 0.0
        %735 = vmatpush1.msra.mxu0 0.0
        %736 = vmatprep.subr.mxu0 0.0
        %737 = vmatpush1.msra.mxu0 0.0
        %738 = vmatprep.subr.mxu0 0.0
        %739 = vmatpush1.msra.mxu0 0.0
        %740 = vmatprep.subr.mxu0 0.0
        %741 = vmatpush1.msra.mxu0 0.0
        %742 = vmatprep.subr.mxu0 0.0
        %743 = vmatpush1.msra.mxu0 0.0
        %744 = vmatprep.subr.mxu0 0.0
        %745 = vmatpush1.msra.mxu0 0.0
        %746 = vmatprep.subr.mxu0 0.0
        %747 = vmatpush1.msra.mxu0 0.0
        %748 = vmatprep.subr.mxu0 0.0
        %749 = vmatpush1.msra.mxu0 0.0
        %750 = vmatprep.subr.mxu0 0.0
        %751 = vmatpush1.msra.mxu0 0.0
        %752 = vmatprep.subr.mxu0 0.0
        %753 = vmatpush1.msra.mxu0 0.0
        %754 = vmatprep.subr.mxu0 0.0
        %755 = vmatpush1.msra.mxu0 0.0
        %756 = vmatprep.subr.mxu0 0.0
        %757 = vmatpush1.msra.mxu0 0.0
        %758 = vmatprep.subr.mxu0 0.0
        %759 = vmatpush1.msra.mxu0 0.0
        %760 = vmatprep.subr.mxu0 0.0
        %761 = vmatpush1.msra.mxu0 0.0
        %762 = vmatprep.subr.mxu0 0.0
        %763 = vmatpush1.msra.mxu0 0.0
        %764 = vmatprep.subr.mxu0 0.0
        %765 = vmatpush1.msra.mxu0 0.0
        %766 = vmatprep.subr.mxu0 0.0
        %767 = vmatpush1.msra.mxu0 0.0
        %768 = vmatprep.subr.mxu0 0.0
        %769 = vmatpush1.msra.mxu0 0.0
        %770 = vmatprep.subr.mxu0 0.0
        %771 = vmatpush1.msra.mxu0 0.0
        %772 = vmatprep.subr.mxu0 0.0
        %773 = vmatpush1.msra.mxu0 0.0
        %774 = vmatprep.subr.mxu0 0.0
        %775 = vmatpush1.msra.mxu0 0.0
        %776 = vmatprep.subr.mxu0 0.0
        %777 = vmatpush1.msra.mxu0 0.0
        %778 = vmatprep.subr.mxu0 0.0
        %779 = vmatpush1.msra.mxu0 0.0
        %780 = vmatprep.subr.mxu0 0.0
        %781 = vmatpush1.msra.mxu0 0.0
        %782 = vmatprep.subr.mxu0 0.0
        %783 = vmatpush1.msra.mxu0 0.0
        %784 = vmatprep.subr.mxu0 0.0
        %785 = vmatpush1.msra.mxu0 0.0
        %786 = vmatprep.subr.mxu0 0.0
        %787 = vmatpush1.msra.mxu0 0.0
        %788 = vmatprep.subr.mxu0 0.0
        %789 = vmatpush1.msra.mxu0 0.0
        %790 = vmatprep.subr.mxu0 0.0
        %791 = vmatpush1.msra.mxu0 0.0
        %792 = vmatprep.subr.mxu0 0.0
        %793 = vmatpush1.msra.mxu0 0.0
        %794 = vmatprep.subr.mxu0 0.0
        %795 = vmatpush1.msra.mxu0 0.0
        %796 = vmatprep.mubr.f32.mxu0 0.0
        %797 = vmatmul.mubr.f32.gmra.mrb[0].mxu0 %v730
        %v798 = vpop.f32.mrb[0].mxu0
        %v799 = vadd.f32 0.0, %v798
        %v800 = vpop.f32.mrb[0].mxu0
        %801 = vdwg.mxu0
        %v803 = vsel %vm681, %v711, 0
        %805 = vmatprep.subr.mxu0 0.0
        %806 = vmatpush1.msra.mxu0 %v523
        %807 = vmatprep.subr.mxu0 0.0
        %808 = vmatpush1.msra.mxu0 0.0
        %809 = vmatprep.subr.mxu0 0.0
        %810 = vmatpush1.msra.mxu0 0.0
        %811 = vmatprep.subr.mxu0 0.0
        %812 = vmatpush1.msra.mxu0 0.0
        %813 = vmatprep.subr.mxu0 0.0
        %814 = vmatpush1.msra.mxu0 0.0
        %815 = vmatprep.subr.mxu0 0.0
        %816 = vmatpush1.msra.mxu0 0.0
        %817 = vmatprep.subr.mxu0 0.0
        %818 = vmatpush1.msra.mxu0 0.0
        %819 = vmatprep.subr.mxu0 0.0
        %820 = vmatpush1.msra.mxu0 0.0
        %821 = vmatprep.subr.mxu0 0.0
        %822 = vmatpush1.msra.mxu0 0.0
        %823 = vmatprep.subr.mxu0 0.0
        %824 = vmatpush1.msra.mxu0 0.0
        %825 = vmatprep.subr.mxu0 0.0
        %826 = vmatpush1.msra.mxu0 0.0
        %827 = vmatprep.subr.mxu0 0.0
        %828 = vmatpush1.msra.mxu0 0.0
        %829 = vmatprep.subr.mxu0 0.0
        %830 = vmatpush1.msra.mxu0 0.0
        %831 = vmatprep.subr.mxu0 0.0
        %832 = vmatpush1.msra.mxu0 0.0
        %833 = vmatprep.subr.mxu0 0.0
        %834 = vmatpush1.msra.mxu0 0.0
        %835 = vmatprep.subr.mxu0 0.0
        %836 = vmatpush1.msra.mxu0 0.0
        %837 = vmatprep.subr.mxu0 0.0
        %838 = vmatpush1.msra.mxu0 0.0
        %839 = vmatprep.subr.mxu0 0.0
        %840 = vmatpush1.msra.mxu0 0.0
        %841 = vmatprep.subr.mxu0 0.0
        %842 = vmatpush1.msra.mxu0 0.0
        %843 = vmatprep.subr.mxu0 0.0
        %844 = vmatpush1.msra.mxu0 0.0
        %845 = vmatprep.subr.mxu0 0.0
        %846 = vmatpush1.msra.mxu0 0.0
        %847 = vmatprep.subr.mxu0 0.0
        %848 = vmatpush1.msra.mxu0 0.0
        %849 = vmatprep.subr.mxu0 0.0
        %850 = vmatpush1.msra.mxu0 0.0
        %851 = vmatprep.subr.mxu0 0.0
        %852 = vmatpush1.msra.mxu0 0.0
        %853 = vmatprep.subr.mxu0 0.0
        %854 = vmatpush1.msra.mxu0 0.0
        %855 = vmatprep.subr.mxu0 0.0
        %856 = vmatpush1.msra.mxu0 0.0
        %857 = vmatprep.subr.mxu0 0.0
        %858 = vmatpush1.msra.mxu0 0.0
        %859 = vmatprep.subr.mxu0 0.0
        %860 = vmatpush1.msra.mxu0 0.0
        %861 = vmatprep.subr.mxu0 0.0
        %862 = vmatpush1.msra.mxu0 0.0
        %863 = vmatprep.subr.mxu0 0.0
        %864 = vmatpush1.msra.mxu0 0.0
        %865 = vmatprep.subr.mxu0 0.0
        %866 = vmatpush1.msra.mxu0 0.0
        %867 = vmatprep.subr.mxu0 0.0
        %868 = vmatpush1.msra.mxu0 0.0
        %869 = vmatprep.mubr.f32.mxu0 0.0
        %870 = vmatmul.mubr.f32.gmra.mrb[0].mxu0 %v803
        %v871 = vpop.f32.mrb[0].mxu0
        %v872 = vadd.f32 0.0, %v871
        %v873 = vpop.f32.mrb[0].mxu0
        %874 = vdwg.mxu0
        %v875 = vld [vmem:[#allocation5] sm:$0xff]
        %v876 = vld [vmem:[#allocation5 + $0x8] sm:$0xff]
        %878 = vset.pattern.permute.xlu0 0
        %879 = vperm.xlu0 %878, %v693
        %v880 = vpop.permute.xlu0 %879
        %883 = vset.pattern.permute.xlu0 0
        %884 = vperm.xlu0 %883, %v695
        %v885 = vpop.permute.xlu0 %884
        %v887 = vmul.f32 %v880, %v875
        %v888 = vmul.f32 %v885, %v876
        %v889 = vadd.f32 %v887, %v799
        %v890 = vadd.f32 %v888, %v872
        %891 = vst.msk [vmem:[#allocation5] sm:$0xff] %vm526, %v889
        %892 = vst.msk [vmem:[#allocation5 + $0x8] sm:$0xff] %vm526, %v890
        // Predicated region
        $region53: #{tpu_custom_call.1} parent=43 // pred_check
          %p893 = pneg %p353
        $region54: #{tpu_custom_call.1} parent=43 // pred_check_branch
          %895 = sbr.rel (%p893) target = $region56
        $region55: #{tpu_custom_call.1} parent=43 // pred_region
          %v896 = vld [vmem:[#allocation4] sm:$0xff]
          %v897 = vld [vmem:[#allocation4 + $0x8] sm:$0xff]
          %v898 = vrcp.pop %v896
          %v899 = vrcp.pop %v897
          %v900 = vld [vmem:[#allocation5] sm:$0xff]
          %v901 = vld [vmem:[#allocation5 + $0x8] sm:$0xff]
          %903 = vset.pattern.permute.xlu0 0
          %904 = vperm.xlu0 %903, %v898
          %v905 = vpop.permute.xlu0 %904
          %908 = vset.pattern.permute.xlu0 0
          %909 = vperm.xlu0 %908, %v899
          %v910 = vpop.permute.xlu0 %909
          %v912 = vmul.f32 %v900, %v905
          %v913 = vmul.f32 %v901, %v910
          %v914 = vld [vmem:[%s4] sm:$0xff]
          %v915 = vld [vmem:[%s4 + $0x8] sm:$0xff]
          %v916 = vld [vmem:[%s4 + $0x10] sm:$0xff]
          %v917 = vld [vmem:[%s4 + $0x18] sm:$0xff]
          %v919 = vsel %vm526, %v912, 0
          %921 = vmatprep.subr.mxu0 0.0
          %922 = vmatpush1.msra.mxu0 %v914
          %923 = vmatprep.subr.mxu0 0.0
          %924 = vmatpush1.msra.mxu0 %v915
          %925 = vmatprep.subr.mxu0 0.0
          %926 = vmatpush1.msra.mxu0 0.0
          %927 = vmatprep.subr.mxu0 0.0
          %928 = vmatpush1.msra.mxu0 0.0
          %929 = vmatprep.subr.mxu0 0.0
          %930 = vmatpush1.msra.mxu0 0.0
          %931 = vmatprep.subr.mxu0 0.0
          %932 = vmatpush1.msra.mxu0 0.0
          %933 = vmatprep.subr.mxu0 0.0
          %934 = vmatpush1.msra.mxu0 0.0
          %935 = vmatprep.subr.mxu0 0.0
          %936 = vmatpush1.msra.mxu0 0.0
          %937 = vmatprep.subr.mxu0 0.0
          %938 = vmatpush1.msra.mxu0 0.0
          %939 = vmatprep.subr.mxu0 0.0
          %940 = vmatpush1.msra.mxu0 0.0
          %941 = vmatprep.subr.mxu0 0.0
          %942 = vmatpush1.msra.mxu0 0.0
          %943 = vmatprep.subr.mxu0 0.0
          %944 = vmatpush1.msra.mxu0 0.0
          %945 = vmatprep.subr.mxu0 0.0
          %946 = vmatpush1.msra.mxu0 0.0
          %947 = vmatprep.subr.mxu0 0.0
          %948 = vmatpush1.msra.mxu0 0.0
          %949 = vmatprep.subr.mxu0 0.0
          %950 = vmatpush1.msra.mxu0 0.0
          %951 = vmatprep.subr.mxu0 0.0
          %952 = vmatpush1.msra.mxu0 0.0
          %953 = vmatprep.subr.mxu0 0.0
          %954 = vmatpush1.msra.mxu0 0.0
          %955 = vmatprep.subr.mxu0 0.0
          %956 = vmatpush1.msra.mxu0 0.0
          %957 = vmatprep.subr.mxu0 0.0
          %958 = vmatpush1.msra.mxu0 0.0
          %959 = vmatprep.subr.mxu0 0.0
          %960 = vmatpush1.msra.mxu0 0.0
          %961 = vmatprep.subr.mxu0 0.0
          %962 = vmatpush1.msra.mxu0 0.0
          %963 = vmatprep.subr.mxu0 0.0
          %964 = vmatpush1.msra.mxu0 0.0
          %965 = vmatprep.subr.mxu0 0.0
          %966 = vmatpush1.msra.mxu0 0.0
          %967 = vmatprep.subr.mxu0 0.0
          %968 = vmatpush1.msra.mxu0 0.0
          %969 = vmatprep.subr.mxu0 0.0
          %970 = vmatpush1.msra.mxu0 0.0
          %971 = vmatprep.subr.mxu0 0.0
          %972 = vmatpush1.msra.mxu0 0.0
          %973 = vmatprep.subr.mxu0 0.0
          %974 = vmatpush1.msra.mxu0 0.0
          %975 = vmatprep.subr.mxu0 0.0
          %976 = vmatpush1.msra.mxu0 0.0
          %977 = vmatprep.subr.mxu0 0.0
          %978 = vmatpush1.msra.mxu0 0.0
          %979 = vmatprep.subr.mxu0 0.0
          %980 = vmatpush1.msra.mxu0 0.0
          %981 = vmatprep.subr.mxu0 0.0
          %982 = vmatpush1.msra.mxu0 0.0
          %983 = vmatprep.subr.mxu0 0.0
          %984 = vmatpush1.msra.mxu0 0.0
          %985 = vmatprep.mubr.f32.mxu0 0.0
          %986 = vmatmul.mubr.f32.gmra.mrb[0].mxu0 %v919
          %v987 = vpop.f32.mrb[0].mxu0
          %v988 = vadd.f32 0.0, %v987
          %v989 = vpop.f32.mrb[0].mxu0
          %990 = vdwg.mxu0
          %v992 = vsel %vm526, %v913, 0
          %994 = vmatprep.subr.mxu0 0.0
          %995 = vmatpush1.msra.mxu0 %v916
          %996 = vmatprep.subr.mxu0 0.0
          %997 = vmatpush1.msra.mxu0 %v917
          %998 = vmatprep.subr.mxu0 0.0
          %999 = vmatpush1.msra.mxu0 0.0
          %1000 = vmatprep.subr.mxu0 0.0
          %1001 = vmatpush1.msra.mxu0 0.0
          %1002 = vmatprep.subr.mxu0 0.0
          %1003 = vmatpush1.msra.mxu0 0.0
          %1004 = vmatprep.subr.mxu0 0.0
          %1005 = vmatpush1.msra.mxu0 0.0
          %1006 = vmatprep.subr.mxu0 0.0
          %1007 = vmatpush1.msra.mxu0 0.0
          %1008 = vmatprep.subr.mxu0 0.0
          %1009 = vmatpush1.msra.mxu0 0.0
          %1010 = vmatprep.subr.mxu0 0.0
          %1011 = vmatpush1.msra.mxu0 0.0
          %1012 = vmatprep.subr.mxu0 0.0
          %1013 = vmatpush1.msra.mxu0 0.0
          %1014 = vmatprep.subr.mxu0 0.0
          %1015 = vmatpush1.msra.mxu0 0.0
          %1016 = vmatprep.subr.mxu0 0.0
          %1017 = vmatpush1.msra.mxu0 0.0
          %1018 = vmatprep.subr.mxu0 0.0
          %1019 = vmatpush1.msra.mxu0 0.0
          %1020 = vmatprep.subr.mxu0 0.0
          %1021 = vmatpush1.msra.mxu0 0.0
          %1022 = vmatprep.subr.mxu0 0.0
          %1023 = vmatpush1.msra.mxu0 0.0
          %1024 = vmatprep.subr.mxu0 0.0
          %1025 = vmatpush1.msra.mxu0 0.0
          %1026 = vmatprep.subr.mxu0 0.0
          %1027 = vmatpush1.msra.mxu0 0.0
          %1028 = vmatprep.subr.mxu0 0.0
          %1029 = vmatpush1.msra.mxu0 0.0
          %1030 = vmatprep.subr.mxu0 0.0
          %1031 = vmatpush1.msra.mxu0 0.0
          %1032 = vmatprep.subr.mxu0 0.0
          %1033 = vmatpush1.msra.mxu0 0.0
          %1034 = vmatprep.subr.mxu0 0.0
          %1035 = vmatpush1.msra.mxu0 0.0
          %1036 = vmatprep.subr.mxu0 0.0
          %1037 = vmatpush1.msra.mxu0 0.0
          %1038 = vmatprep.subr.mxu0 0.0
          %1039 = vmatpush1.msra.mxu0 0.0
          %1040 = vmatprep.subr.mxu0 0.0
          %1041 = vmatpush1.msra.mxu0 0.0
          %1042 = vmatprep.subr.mxu0 0.0
          %1043 = vmatpush1.msra.mxu0 0.0
          %1044 = vmatprep.subr.mxu0 0.0
          %1045 = vmatpush1.msra.mxu0 0.0
          %1046 = vmatprep.subr.mxu0 0.0
          %1047 = vmatpush1.msra.mxu0 0.0
          %1048 = vmatprep.subr.mxu0 0.0
          %1049 = vmatpush1.msra.mxu0 0.0
          %1050 = vmatprep.subr.mxu0 0.0
          %1051 = vmatpush1.msra.mxu0 0.0
          %1052 = vmatprep.subr.mxu0 0.0
          %1053 = vmatpush1.msra.mxu0 0.0
          %1054 = vmatprep.subr.mxu0 0.0
          %1055 = vmatpush1.msra.mxu0 0.0
          %1056 = vmatprep.subr.mxu0 0.0
          %1057 = vmatpush1.msra.mxu0 0.0
          %1058 = vmatprep.mubr.f32.mxu0 0.0
          %1059 = vmatmul.mubr.f32.gmra.mrb[0].mxu0 %v992
          %v1060 = vpop.f32.mrb[0].mxu0
          %v1061 = vadd.f32 0.0, %v1060
          %v1062 = vpop.f32.mrb[0].mxu0
          %1063 = vdwg.mxu0
          %vm1064 = vcmask 261120
          %v1065 = vsel %vm1064, %v988, 0.0
          %v1066 = vsel %vm1064, %v1061, 0.0
          %v1067 = vadd.f32 %v1065, %v1066
          %v1068 = vld [vmem:[%s5] sm:$0x1]
          %v1070 = vlaneseq
          %v1071 = vshrl.u32 %v1070, 7
          %v1072 = vsub.s32 0, %v1071
          %v1073 = vrot.slane %v1068, %v1072
          %v1075 = vadd.f32 %v1067, %v1073
          %1076 = vst.msk [vmem:[%s336] sm:$0xff] %vm1064, %v1075
        $region56: #{tpu_custom_call.1} parent=43 // pred_fallthru
          _
        %s1077 = sand.u32 %s199, 1
        %s1078 = scalar_lea.sflag [#allocation8], %s1077
        %s1079 = sand.u32 %s199, 1
        %s1080 = smul.addr %s1079, 8
        %s1081 = scalar_lea.vmem [#allocation9], %s1080
        // Predicated region
        $region57: #{tpu_custom_call.1} parent=43 // pred_check
          %p1082 = pneg %p209
        $region58: #{tpu_custom_call.1} parent=43 // pred_check_branch
          %1084 = sbr.rel (%p1082) target = $region60
        $region59: #{tpu_custom_call.1} parent=43 // pred_region
          %s1086 = ssub.s32 128, 128
          %1087 = vsyncadd %s1078, %s1086
          %s1088 = sadd.s32 %s29, %s28
          %s1089 = smul.addr %s1088, 128
          %s1090 = scalar_lea.hbm %s6, %s1089
          %s1092 = sshll.u32 %s1081, 4
          %s1093 = int_to_ptr.vmem [resolvable:$true] %s1092
          %1095 = dma.vmem_to_hbm [thread:$0]  %s1093, 128, %s1090, %s1078
        $region60: #{tpu_custom_call.1} parent=43 // pred_fallthru
          _
      $region44: #{tpu_custom_call.1} parent=5 // pred_fallthru
        _
      %p1096 = scmp.le.s32.totalorder 2, %s18
      // Predicated region
      $region61: #{tpu_custom_call.1} parent=5 // pred_check
        %p1097 = pneg %p1096
      $region62: #{tpu_custom_call.1} parent=5 // pred_check_branch
        %1099 = sbr.rel (%p1097) target = $region64
      $region63: #{tpu_custom_call.1} parent=5 // pred_region
        %s1100 = ssub.s32 %s18, 2
        // Predicated region
        $region65: #{tpu_custom_call.1} parent=63 // pred_check
          %p1101 = pneg %p215
        $region66: #{tpu_custom_call.1} parent=63 // pred_check_branch
          %1103 = sbr.rel (%p1101) target = $region68
        $region67: #{tpu_custom_call.1} parent=63 // pred_region
          %s1104 = sand.u32 %s200, 1
          %s1105 = scalar_lea.sflag [#allocation8], %s1104
          %s1106 = sand.u32 %s200, 1
          %s1107 = smul.addr %s1106, 8
          %s1108 = scalar_lea.vmem [#allocation9], %s1107
          %1109 = dma.done %s1105, 128
        $region68: #{tpu_custom_call.1} parent=63 // pred_fallthru
          _
      $region64: #{tpu_custom_call.1} parent=5 // pred_fallthru
        _
    $region6: #{tpu_custom_call.1} parent=1 // loop_footer
      %s22 = sadd.s32 1, %s18
    $region7: #{tpu_custom_call.1} parent=1 // loop_footer_branch
      %17 = sbr.rel target = $region3
    $region8: #{tpu_custom_call.1} parent=1 // loop_exit
      _
    %1110 = vsyncpa [#allocation7], 1
    %s1111 = scalar_lea.sflag [#allocation7], 1
    %1112 = vsyncpa %s1111, 1
    %1113 = vsyncpa [#allocation8], 1
    %s1114 = scalar_lea.sflag [#allocation8], 1
    %1115 = vsyncpa %s1114, 1

</llo_original>
